<compile_context>
chip_gen: v5e
topology: v5e:2x2
jax: 0.10.0
libtpu: 0.0.40
codegen_flags: <defaults>
</compile_context>

<pallas_src>
import math

import jax
import jax.numpy as jnp
from jax.experimental import pallas as pl
from jax.experimental.pallas import tpu as pltpu


def mult_kernel(x_ref, t_ref, convw_ref, tew_ref, teb_ref,
                ln0g_ref, ln0b_ref,
                qw_ref, qb_ref, kw_ref, kb_ref, vw_ref, vb_ref,
                ow_ref, ob_ref,
                ln1g_ref, ln1b_ref,
                f1w_ref, f1b_ref, f2w_ref, f2b_ref,
                lnfg_ref, lnfb_ref,
                p1w_ref, p1b_ref, p2w_ref, p2b_ref,
                olw_ref, olb_ref,
                out_ref):
    d = out_ref.shape[-1]
    num_layers = qw_ref.shape[0]
    T = x_ref.shape[0]
    embed_scale = jnp.float32(math.sqrt(d))
    attn_scale = jnp.float32(1.0 / math.sqrt(d))   # num_heads == 1 -> head_dim == d

    def layer_norm(v, g, b):
        mu = jnp.mean(v, axis=-1, keepdims=True)
        c = v - mu
        var = jnp.mean(c * c, axis=-1, keepdims=True)
        return c * jax.lax.rsqrt(var + jnp.float32(1e-5)) * g + b

    # Conv1d(kernel_size=1, bias=False) projection == matmul over channels.
    h = jnp.dot(x_ref[...], convw_ref[...], preferred_element_type=jnp.float32)   # (T, d)
    # TimeEmbedding: tanh(Linear(1, d)(t)) -- in_features == 1 so it's a broadcast mul.
    te = jnp.tanh(t_ref[...] * tew_ref[...] + teb_ref[...])                       # (T, d)
    x = embed_scale * h + te                                                      # (T, d)

    # Statically unrolled pre-norm encoder layers (num_heads == 1).
    for l in range(num_layers):
        residual = x
        xn = layer_norm(x, ln0g_ref[l], ln0b_ref[l])
        q = (jnp.dot(xn, qw_ref[l], preferred_element_type=jnp.float32) + qb_ref[l]) * attn_scale
        k = jnp.dot(xn, kw_ref[l], preferred_element_type=jnp.float32) + kb_ref[l]
        v = jnp.dot(xn, vw_ref[l], preferred_element_type=jnp.float32) + vb_ref[l]
        scores = jax.lax.dot_general(q, k, (((1,), (1,)), ((), ())),
                                     preferred_element_type=jnp.float32)          # (T, T)
        scores = scores - jnp.max(scores, axis=-1, keepdims=True)
        e = jnp.exp(scores)
        probs = e / jnp.sum(e, axis=-1, keepdims=True)
        attn = jnp.dot(probs, v, preferred_element_type=jnp.float32)              # (T, d)
        attn = jnp.dot(attn, ow_ref[l], preferred_element_type=jnp.float32) + ob_ref[l]
        x = residual + attn

        residual = x
        xn = layer_norm(x, ln1g_ref[l], ln1b_ref[l])
        ff = jnp.maximum(jnp.dot(xn, f1w_ref[l], preferred_element_type=jnp.float32) + f1b_ref[l], 0.0)
        ff = jnp.dot(ff, f2w_ref[l], preferred_element_type=jnp.float32) + f2b_ref[l]
        x = residual + ff

    # Final encoder LayerNorm, then the residual MLP head on the last time step.
    x = layer_norm(x, lnfg_ref[...], lnfb_ref[...])
    last = x[T - 1:T, :]                                                           # (1, d)
    y = jnp.maximum(jnp.dot(last, p1w_ref[...], preferred_element_type=jnp.float32) + p1b_ref[...], 0.0)
    y = jnp.dot(y, p2w_ref[...], preferred_element_type=jnp.float32) + p2b_ref[...]
    y = y + last
    out = jnp.dot(y, olw_ref[...], preferred_element_type=jnp.float32) + olb_ref[...]
    out_ref[...] = out.astype(out_ref.dtype)


def mult_forward(x, t, params):
    """x: (1, T, orig_d) f32; t: (T,) f32 -> (1, d) f32."""
    B, T, orig_d = x.shape
    assert B == 1, "TimeEmbedding in the reference model only supports one sample"
    d = params["conv_w"].shape[0]
    L = len(params["layers"])

    x2 = x[0]                                   # (T, orig_d)
    t2 = t.reshape(T, 1).astype(jnp.float32)

    # Pre-transpose / pre-stack weights host-side (no in-kernel transposes).
    # NOTE: if orig_d == d the PyTorch model skips the conv; pass an identity conv_w then.
    conv_wt = params["conv_w"].T                # (orig_d, d)
    te_w = params["te_w"].reshape(1, d)
    te_b = params["te_b"].reshape(1, d)

    def stk(fn):
        return jnp.stack([fn(p) for p in params["layers"]], axis=0)

    ln0g = stk(lambda p: p["ln0_g"].reshape(1, d))
    ln0b = stk(lambda p: p["ln0_b"].reshape(1, d))
    qw = stk(lambda p: p["in_w"][0:d, :].T)
    kw = stk(lambda p: p["in_w"][d:2 * d, :].T)
    vw = stk(lambda p: p["in_w"][2 * d:3 * d, :].T)
    qb = stk(lambda p: p["in_b"][0:d].reshape(1, d))
    kb = stk(lambda p: p["in_b"][d:2 * d].reshape(1, d))
    vb = stk(lambda p: p["in_b"][2 * d:3 * d].reshape(1, d))
    ow = stk(lambda p: p["out_w"].T)
    ob = stk(lambda p: p["out_b"].reshape(1, d))
    ln1g = stk(lambda p: p["ln1_g"].reshape(1, d))
    ln1b = stk(lambda p: p["ln1_b"].reshape(1, d))
    f1w = stk(lambda p: p["fc1_w"].T)
    f1b = stk(lambda p: p["fc1_b"].reshape(1, 4 * d))
    f2w = stk(lambda p: p["fc2_w"].T)
    f2b = stk(lambda p: p["fc2_b"].reshape(1, d))

    lnfg = params["lnf_g"].reshape(1, d)
    lnfb = params["lnf_b"].reshape(1, d)
    p1w = params["proj1_w"].T
    p1b = params["proj1_b"].reshape(1, d)
    p2w = params["proj2_w"].T
    p2b = params["proj2_b"].reshape(1, d)
    olw = params["outl_w"].T
    olb = params["outl_b"].reshape(1, d)

    args = (x2, t2, conv_wt, te_w, te_b,
            ln0g, ln0b, qw, qb, kw, kb, vw, vb, ow, ob,
            ln1g, ln1b, f1w, f1b, f2w, f2b,
            lnfg, lnfb, p1w, p1b, p2w, p2b, olw, olb)

    return pl.pallas_call(
        mult_kernel,
        out_shape=jax.ShapeDtypeStruct((1, d), jnp.float32),
        in_specs=[pl.BlockSpec(memory_space=pltpu.MemorySpace.VMEM)] * len(args),
        out_specs=pl.BlockSpec(memory_space=pltpu.MemorySpace.VMEM),
    )(*args)


# ----------------------- deterministic parameter construction -----------------------

def _xavier_uniform(key, shape):
    fan_out, fan_in = shape
    bound = math.sqrt(6.0 / (fan_in + fan_out))
    return jax.random.uniform(key, shape, jnp.float32, -bound, bound)


def init_params(key, orig_d, d, layers):
    # Mirrors MULTModel_1.init_weights: nn.Linear -> xavier weight + U(0,1) bias;
    # everything else (Conv1d, LayerNorm, MHA in_proj) -> N(0,1).
    keys = iter(jax.random.split(key, 11 + 12 * layers))
    nxt = lambda: next(keys)
    params = {
        "conv_w": jax.random.normal(nxt(), (d, orig_d), jnp.float32),
        "te_w": _xavier_uniform(nxt(), (d, 1)),
        "te_b": jax.random.uniform(nxt(), (d,), jnp.float32, 0.0, 1.0),
        "lnf_g": jax.random.normal(nxt(), (d,), jnp.float32),
        "lnf_b": jax.random.normal(nxt(), (d,), jnp.float32),
        "proj1_w": _xavier_uniform(nxt(), (d, d)),
        "proj1_b": jax.random.uniform(nxt(), (d,), jnp.float32, 0.0, 1.0),
        "proj2_w": _xavier_uniform(nxt(), (d, d)),
        "proj2_b": jax.random.uniform(nxt(), (d,), jnp.float32, 0.0, 1.0),
        "outl_w": _xavier_uniform(nxt(), (d, d)),
        "outl_b": jax.random.uniform(nxt(), (d,), jnp.float32, 0.0, 1.0),
        "layers": [],
    }
    for _ in range(layers):
        params["layers"].append({
            "ln0_g": jax.random.normal(nxt(), (d,), jnp.float32),
            "ln0_b": jax.random.normal(nxt(), (d,), jnp.float32),
            "in_w": jax.random.normal(nxt(), (3 * d, d), jnp.float32),
            "in_b": jax.random.normal(nxt(), (3 * d,), jnp.float32),
            "out_w": _xavier_uniform(nxt(), (d, d)),
            "out_b": jax.random.uniform(nxt(), (d,), jnp.float32, 0.0, 1.0),
            "ln1_g": jax.random.normal(nxt(), (d,), jnp.float32),
            "ln1_b": jax.random.normal(nxt(), (d,), jnp.float32),
            "fc1_w": _xavier_uniform(nxt(), (4 * d, d)),
            "fc1_b": jax.random.uniform(nxt(), (4 * d,), jnp.float32, 0.0, 1.0),
            "fc2_w": _xavier_uniform(nxt(), (d, 4 * d)),
            "fc2_b": jax.random.uniform(nxt(), (d,), jnp.float32, 0.0, 1.0),
        })
    return params


# ------------------------------- pure-JAX reference ---------------------------------

def reference_forward(x, t, params):
    d = params["conv_w"].shape[0]
    T = t.shape[0]
    scale = math.sqrt(d)

    def layer_norm(v, g, b):
        mu = jnp.mean(v, axis=-1, keepdims=True)
        c = v - mu
        var = jnp.mean(c * c, axis=-1, keepdims=True)
        return c * jax.lax.rsqrt(var + 1e-5) * g.reshape(1, -1) + b.reshape(1, -1)

    h = x[0] @ params["conv_w"].T                                       # (T, d)
    te = jnp.tanh(t.reshape(T, 1) * params["te_w"].reshape(1, d)
                  + params["te_b"].reshape(1, d))
    xx = scale * h + te

    for p in params["layers"]:
        res = xx
        xn = layer_norm(xx, p["ln0_g"], p["ln0_b"])
        qkv = xn @ p["in_w"].T + p["in_b"]
        q, k, v = jnp.split(qkv, 3, axis=-1)
        q = q / math.sqrt(d)
        s = q @ k.T
        s = s - jnp.max(s, axis=-1, keepdims=True)
        e = jnp.exp(s)
        w = e / jnp.sum(e, axis=-1, keepdims=True)
        a = (w @ v) @ p["out_w"].T + p["out_b"]
        xx = res + a
        res = xx
        xn = layer_norm(xx, p["ln1_g"], p["ln1_b"])
        ff = jnp.maximum(xn @ p["fc1_w"].T + p["fc1_b"], 0.0)
        ff = ff @ p["fc2_w"].T + p["fc2_b"]
        xx = res + ff

    xx = layer_norm(xx, params["lnf_g"], params["lnf_b"])
    last = xx[-1:, :]                                                   # (1, d)
    y = jnp.maximum(last @ params["proj1_w"].T + params["proj1_b"], 0.0)
    y = y @ params["proj2_w"].T + params["proj2_b"]
    y = y + last
    return y @ params["outl_w"].T + params["outl_b"]


if __name__ == "__main__":
    orig_d, d, layers, T = 20, 30, 4, 8          # HP.orig_d_1, HP.d_1, HP.layers; small seq

    key = jax.random.PRNGKey(0)
    kp, kx, kt = jax.random.split(key, 3)
    params = init_params(kp, orig_d, d, layers)
    x = jax.random.normal(kx, (1, T, orig_d), jnp.float32)
    t = jax.random.uniform(kt, (T,), jnp.float32)

    out = mult_forward(x, t, params)
    out = jax.block_until_ready(out)
    assert out.shape == (1, d)
    assert bool(jnp.all(jnp.isfinite(out)))

    ref = reference_forward(x, t, params)
    assert bool(jnp.allclose(out, ref, rtol=2e-3, atol=2e-3)), (out, ref)

    print("KERNEL_OK")
</pallas_src>

<mosaic_0001>
module attributes {stable_mosaic.version = 11 : i64} {
  func.func @mult_kernel(%arg0: memref<8x20xf32, #tpu.memory_space<vmem>>, %arg1: memref<8x1xf32, #tpu.memory_space<vmem>>, %arg2: memref<20x30xf32, #tpu.memory_space<vmem>>, %arg3: memref<1x30xf32, #tpu.memory_space<vmem>>, %arg4: memref<1x30xf32, #tpu.memory_space<vmem>>, %arg5: memref<4x1x30xf32, #tpu.memory_space<vmem>>, %arg6: memref<4x1x30xf32, #tpu.memory_space<vmem>>, %arg7: memref<4x30x30xf32, #tpu.memory_space<vmem>>, %arg8: memref<4x1x30xf32, #tpu.memory_space<vmem>>, %arg9: memref<4x30x30xf32, #tpu.memory_space<vmem>>, %arg10: memref<4x1x30xf32, #tpu.memory_space<vmem>>, %arg11: memref<4x30x30xf32, #tpu.memory_space<vmem>>, %arg12: memref<4x1x30xf32, #tpu.memory_space<vmem>>, %arg13: memref<4x30x30xf32, #tpu.memory_space<vmem>>, %arg14: memref<4x1x30xf32, #tpu.memory_space<vmem>>, %arg15: memref<4x1x30xf32, #tpu.memory_space<vmem>>, %arg16: memref<4x1x30xf32, #tpu.memory_space<vmem>>, %arg17: memref<4x30x120xf32, #tpu.memory_space<vmem>>, %arg18: memref<4x1x120xf32, #tpu.memory_space<vmem>>, %arg19: memref<4x120x30xf32, #tpu.memory_space<vmem>>, %arg20: memref<4x1x30xf32, #tpu.memory_space<vmem>>, %arg21: memref<1x30xf32, #tpu.memory_space<vmem>>, %arg22: memref<1x30xf32, #tpu.memory_space<vmem>>, %arg23: memref<30x30xf32, #tpu.memory_space<vmem>>, %arg24: memref<1x30xf32, #tpu.memory_space<vmem>>, %arg25: memref<30x30xf32, #tpu.memory_space<vmem>>, %arg26: memref<1x30xf32, #tpu.memory_space<vmem>>, %arg27: memref<30x30xf32, #tpu.memory_space<vmem>>, %arg28: memref<1x30xf32, #tpu.memory_space<vmem>>, %arg29: memref<1x30xf32, #tpu.memory_space<vmem>>) attributes {dimension_semantics = [], scalar_prefetch = 0 : i64, scratch_operands = 0 : i64, tpu.core_type = #tpu.core_type<tc>} {
    %c0 = arith.constant 0 : index
    %c0_0 = arith.constant 0 : index
    %0 = vector.load %arg0[%c0, %c0_0] : memref<8x20xf32, #tpu.memory_space<vmem>>, vector<8x20xf32>
    %c0_1 = arith.constant 0 : index
    %c0_2 = arith.constant 0 : index
    %1 = vector.load %arg2[%c0_1, %c0_2] : memref<20x30xf32, #tpu.memory_space<vmem>>, vector<20x30xf32>
    %cst = arith.constant dense<0.000000e+00> : vector<8x30xf32>
    %2 = tpu.matmul %0, %1, %cst {dimension_numbers = #tpu.dot_dimension_numbers<[1], [0], [0], [1], [0, 0, 1, 1], [], []>} : vector<8x20xf32>, vector<20x30xf32>, vector<8x30xf32> -> vector<8x30xf32>
    %c0_3 = arith.constant 0 : index
    %c0_4 = arith.constant 0 : index
    %3 = vector.load %arg1[%c0_3, %c0_4] : memref<8x1xf32, #tpu.memory_space<vmem>>, vector<8x1xf32>
    %c0_5 = arith.constant 0 : index
    %c0_6 = arith.constant 0 : index
    %4 = vector.load %arg3[%c0_5, %c0_6] : memref<1x30xf32, #tpu.memory_space<vmem>>, vector<1x30xf32>
    %5 = vector.broadcast %3 : vector<8x1xf32> to vector<8x30xf32>
    %6 = vector.broadcast %4 : vector<1x30xf32> to vector<8x30xf32>
    %7 = arith.mulf %5, %6 : vector<8x30xf32>
    %c0_7 = arith.constant 0 : index
    %c0_8 = arith.constant 0 : index
    %8 = vector.load %arg4[%c0_7, %c0_8] : memref<1x30xf32, #tpu.memory_space<vmem>>, vector<1x30xf32>
    %9 = vector.broadcast %8 : vector<1x30xf32> to vector<8x30xf32>
    %10 = arith.addf %7, %9 : vector<8x30xf32>
    %11 = math.tanh %10 : vector<8x30xf32>
    %cst_9 = arith.constant 5.47722578 : f32
    %12 = vector.broadcast %cst_9 : f32 to vector<8x30xf32>
    %13 = arith.mulf %12, %2 : vector<8x30xf32>
    %14 = arith.addf %13, %11 : vector<8x30xf32>
    %c0_10 = arith.constant 0 : index
    %c0_11 = arith.constant 0 : index
    %c0_12 = arith.constant 0 : index
    %15 = vector.load %arg5[%c0_10, %c0_11, %c0_12] : memref<4x1x30xf32, #tpu.memory_space<vmem>>, vector<1x1x30xf32>
    %16 = vector.shape_cast %15 : vector<1x1x30xf32> to vector<1x30xf32>
    %c0_13 = arith.constant 0 : index
    %c0_14 = arith.constant 0 : index
    %c0_15 = arith.constant 0 : index
    %17 = vector.load %arg6[%c0_13, %c0_14, %c0_15] : memref<4x1x30xf32, #tpu.memory_space<vmem>>, vector<1x1x30xf32>
    %18 = vector.shape_cast %17 : vector<1x1x30xf32> to vector<1x30xf32>
    %cst_16 = arith.constant dense<0.000000e+00> : vector<8xf32>
    %19 = vector.multi_reduction <add>, %14, %cst_16 [1] : vector<8x30xf32> to vector<8xf32>
    %20 = vector.shape_cast %19 : vector<8xf32> to vector<8x1xf32>
    %cst_17 = arith.constant 3.000000e+01 : f32
    %21 = vector.broadcast %cst_17 : f32 to vector<8x1xf32>
    %22 = arith.divf %20, %21 : vector<8x1xf32>
    %23 = vector.broadcast %22 : vector<8x1xf32> to vector<8x30xf32>
    %24 = arith.subf %14, %23 : vector<8x30xf32>
    %25 = arith.mulf %24, %24 : vector<8x30xf32>
    %cst_18 = arith.constant dense<0.000000e+00> : vector<8xf32>
    %26 = vector.multi_reduction <add>, %25, %cst_18 [1] : vector<8x30xf32> to vector<8xf32>
    %27 = vector.shape_cast %26 : vector<8xf32> to vector<8x1xf32>
    %cst_19 = arith.constant 3.000000e+01 : f32
    %28 = vector.broadcast %cst_19 : f32 to vector<8x1xf32>
    %29 = arith.divf %27, %28 : vector<8x1xf32>
    %cst_20 = arith.constant 9.99999974E-6 : f32
    %30 = vector.broadcast %cst_20 : f32 to vector<8x1xf32>
    %31 = arith.addf %29, %30 : vector<8x1xf32>
    %32 = math.rsqrt %31 : vector<8x1xf32>
    %33 = vector.broadcast %32 : vector<8x1xf32> to vector<8x30xf32>
    %34 = arith.mulf %24, %33 : vector<8x30xf32>
    %35 = vector.broadcast %16 : vector<1x30xf32> to vector<8x30xf32>
    %36 = arith.mulf %34, %35 : vector<8x30xf32>
    %37 = vector.broadcast %18 : vector<1x30xf32> to vector<8x30xf32>
    %38 = arith.addf %36, %37 : vector<8x30xf32>
    %c0_21 = arith.constant 0 : index
    %c0_22 = arith.constant 0 : index
    %c0_23 = arith.constant 0 : index
    %39 = vector.load %arg7[%c0_21, %c0_22, %c0_23] : memref<4x30x30xf32, #tpu.memory_space<vmem>>, vector<1x30x30xf32>
    %40 = vector.shape_cast %39 : vector<1x30x30xf32> to vector<30x30xf32>
    %cst_24 = arith.constant dense<0.000000e+00> : vector<8x30xf32>
    %41 = tpu.matmul %38, %40, %cst_24 {dimension_numbers = #tpu.dot_dimension_numbers<[1], [0], [0], [1], [0, 0, 1, 1], [], []>} : vector<8x30xf32>, vector<30x30xf32>, vector<8x30xf32> -> vector<8x30xf32>
    %c0_25 = arith.constant 0 : index
    %c0_26 = arith.constant 0 : index
    %c0_27 = arith.constant 0 : index
    %42 = vector.load %arg8[%c0_25, %c0_26, %c0_27] : memref<4x1x30xf32, #tpu.memory_space<vmem>>, vector<1x1x30xf32>
    %43 = vector.shape_cast %42 : vector<1x1x30xf32> to vector<1x30xf32>
    %44 = vector.broadcast %43 : vector<1x30xf32> to vector<8x30xf32>
    %45 = arith.addf %41, %44 : vector<8x30xf32>
    %cst_28 = arith.constant 0.182574183 : f32
    %46 = vector.broadcast %cst_28 : f32 to vector<8x30xf32>
    %47 = arith.mulf %45, %46 : vector<8x30xf32>
    %c0_29 = arith.constant 0 : index
    %c0_30 = arith.constant 0 : index
    %c0_31 = arith.constant 0 : index
    %48 = vector.load %arg9[%c0_29, %c0_30, %c0_31] : memref<4x30x30xf32, #tpu.memory_space<vmem>>, vector<1x30x30xf32>
    %49 = vector.shape_cast %48 : vector<1x30x30xf32> to vector<30x30xf32>
    %cst_32 = arith.constant dense<0.000000e+00> : vector<8x30xf32>
    %50 = tpu.matmul %38, %49, %cst_32 {dimension_numbers = #tpu.dot_dimension_numbers<[1], [0], [0], [1], [0, 0, 1, 1], [], []>} : vector<8x30xf32>, vector<30x30xf32>, vector<8x30xf32> -> vector<8x30xf32>
    %c0_33 = arith.constant 0 : index
    %c0_34 = arith.constant 0 : index
    %c0_35 = arith.constant 0 : index
    %51 = vector.load %arg10[%c0_33, %c0_34, %c0_35] : memref<4x1x30xf32, #tpu.memory_space<vmem>>, vector<1x1x30xf32>
    %52 = vector.shape_cast %51 : vector<1x1x30xf32> to vector<1x30xf32>
    %53 = vector.broadcast %52 : vector<1x30xf32> to vector<8x30xf32>
    %54 = arith.addf %50, %53 : vector<8x30xf32>
    %c0_36 = arith.constant 0 : index
    %c0_37 = arith.constant 0 : index
    %c0_38 = arith.constant 0 : index
    %55 = vector.load %arg11[%c0_36, %c0_37, %c0_38] : memref<4x30x30xf32, #tpu.memory_space<vmem>>, vector<1x30x30xf32>
    %56 = vector.shape_cast %55 : vector<1x30x30xf32> to vector<30x30xf32>
    %cst_39 = arith.constant dense<0.000000e+00> : vector<8x30xf32>
    %57 = tpu.matmul %38, %56, %cst_39 {dimension_numbers = #tpu.dot_dimension_numbers<[1], [0], [0], [1], [0, 0, 1, 1], [], []>} : vector<8x30xf32>, vector<30x30xf32>, vector<8x30xf32> -> vector<8x30xf32>
    %c0_40 = arith.constant 0 : index
    %c0_41 = arith.constant 0 : index
    %c0_42 = arith.constant 0 : index
    %58 = vector.load %arg12[%c0_40, %c0_41, %c0_42] : memref<4x1x30xf32, #tpu.memory_space<vmem>>, vector<1x1x30xf32>
    %59 = vector.shape_cast %58 : vector<1x1x30xf32> to vector<1x30xf32>
    %60 = vector.broadcast %59 : vector<1x30xf32> to vector<8x30xf32>
    %61 = arith.addf %57, %60 : vector<8x30xf32>
    %cst_43 = arith.constant dense<0.000000e+00> : vector<8x8xf32>
    %62 = tpu.matmul %47, %54, %cst_43 {dimension_numbers = #tpu.dot_dimension_numbers<[1], [1], [0], [0], [0, 0, 1, 0], [], []>} : vector<8x30xf32>, vector<8x30xf32>, vector<8x8xf32> -> vector<8x8xf32>
    %cst_44 = arith.constant dense<0xFF800000> : vector<8xf32>
    %63 = vector.multi_reduction <maximumf>, %62, %cst_44 [1] : vector<8x8xf32> to vector<8xf32>
    %64 = vector.shape_cast %63 : vector<8xf32> to vector<8x1xf32>
    %65 = vector.broadcast %64 : vector<8x1xf32> to vector<8x8xf32>
    %66 = arith.subf %62, %65 : vector<8x8xf32>
    %67 = math.exp %66 : vector<8x8xf32>
    %cst_45 = arith.constant dense<0.000000e+00> : vector<8xf32>
    %68 = vector.multi_reduction <add>, %67, %cst_45 [1] : vector<8x8xf32> to vector<8xf32>
    %69 = vector.shape_cast %68 : vector<8xf32> to vector<8x1xf32>
    %70 = vector.broadcast %69 : vector<8x1xf32> to vector<8x8xf32>
    %71 = arith.divf %67, %70 : vector<8x8xf32>
    %cst_46 = arith.constant dense<0.000000e+00> : vector<8x30xf32>
    %72 = tpu.matmul %71, %61, %cst_46 {dimension_numbers = #tpu.dot_dimension_numbers<[1], [0], [0], [1], [0, 0, 1, 1], [], []>} : vector<8x8xf32>, vector<8x30xf32>, vector<8x30xf32> -> vector<8x30xf32>
    %c0_47 = arith.constant 0 : index
    %c0_48 = arith.constant 0 : index
    %c0_49 = arith.constant 0 : index
    %73 = vector.load %arg13[%c0_47, %c0_48, %c0_49] : memref<4x30x30xf32, #tpu.memory_space<vmem>>, vector<1x30x30xf32>
    %74 = vector.shape_cast %73 : vector<1x30x30xf32> to vector<30x30xf32>
    %cst_50 = arith.constant dense<0.000000e+00> : vector<8x30xf32>
    %75 = tpu.matmul %72, %74, %cst_50 {dimension_numbers = #tpu.dot_dimension_numbers<[1], [0], [0], [1], [0, 0, 1, 1], [], []>} : vector<8x30xf32>, vector<30x30xf32>, vector<8x30xf32> -> vector<8x30xf32>
    %c0_51 = arith.constant 0 : index
    %c0_52 = arith.constant 0 : index
    %c0_53 = arith.constant 0 : index
    %76 = vector.load %arg14[%c0_51, %c0_52, %c0_53] : memref<4x1x30xf32, #tpu.memory_space<vmem>>, vector<1x1x30xf32>
    %77 = vector.shape_cast %76 : vector<1x1x30xf32> to vector<1x30xf32>
    %78 = vector.broadcast %77 : vector<1x30xf32> to vector<8x30xf32>
    %79 = arith.addf %75, %78 : vector<8x30xf32>
    %80 = arith.addf %14, %79 : vector<8x30xf32>
    %c0_54 = arith.constant 0 : index
    %c0_55 = arith.constant 0 : index
    %c0_56 = arith.constant 0 : index
    %81 = vector.load %arg15[%c0_54, %c0_55, %c0_56] : memref<4x1x30xf32, #tpu.memory_space<vmem>>, vector<1x1x30xf32>
    %82 = vector.shape_cast %81 : vector<1x1x30xf32> to vector<1x30xf32>
    %c0_57 = arith.constant 0 : index
    %c0_58 = arith.constant 0 : index
    %c0_59 = arith.constant 0 : index
    %83 = vector.load %arg16[%c0_57, %c0_58, %c0_59] : memref<4x1x30xf32, #tpu.memory_space<vmem>>, vector<1x1x30xf32>
    %84 = vector.shape_cast %83 : vector<1x1x30xf32> to vector<1x30xf32>
    %cst_60 = arith.constant dense<0.000000e+00> : vector<8xf32>
    %85 = vector.multi_reduction <add>, %80, %cst_60 [1] : vector<8x30xf32> to vector<8xf32>
    %86 = vector.shape_cast %85 : vector<8xf32> to vector<8x1xf32>
    %cst_61 = arith.constant 3.000000e+01 : f32
    %87 = vector.broadcast %cst_61 : f32 to vector<8x1xf32>
    %88 = arith.divf %86, %87 : vector<8x1xf32>
    %89 = vector.broadcast %88 : vector<8x1xf32> to vector<8x30xf32>
    %90 = arith.subf %80, %89 : vector<8x30xf32>
    %91 = arith.mulf %90, %90 : vector<8x30xf32>
    %cst_62 = arith.constant dense<0.000000e+00> : vector<8xf32>
    %92 = vector.multi_reduction <add>, %91, %cst_62 [1] : vector<8x30xf32> to vector<8xf32>
    %93 = vector.shape_cast %92 : vector<8xf32> to vector<8x1xf32>
    %cst_63 = arith.constant 3.000000e+01 : f32
    %94 = vector.broadcast %cst_63 : f32 to vector<8x1xf32>
    %95 = arith.divf %93, %94 : vector<8x1xf32>
    %cst_64 = arith.constant 9.99999974E-6 : f32
    %96 = vector.broadcast %cst_64 : f32 to vector<8x1xf32>
    %97 = arith.addf %95, %96 : vector<8x1xf32>
    %98 = math.rsqrt %97 : vector<8x1xf32>
    %99 = vector.broadcast %98 : vector<8x1xf32> to vector<8x30xf32>
    %100 = arith.mulf %90, %99 : vector<8x30xf32>
    %101 = vector.broadcast %82 : vector<1x30xf32> to vector<8x30xf32>
    %102 = arith.mulf %100, %101 : vector<8x30xf32>
    %103 = vector.broadcast %84 : vector<1x30xf32> to vector<8x30xf32>
    %104 = arith.addf %102, %103 : vector<8x30xf32>
    %c0_65 = arith.constant 0 : index
    %c0_66 = arith.constant 0 : index
    %c0_67 = arith.constant 0 : index
    %105 = vector.load %arg17[%c0_65, %c0_66, %c0_67] : memref<4x30x120xf32, #tpu.memory_space<vmem>>, vector<1x30x120xf32>
    %106 = vector.shape_cast %105 : vector<1x30x120xf32> to vector<30x120xf32>
    %cst_68 = arith.constant dense<0.000000e+00> : vector<8x120xf32>
    %107 = tpu.matmul %104, %106, %cst_68 {dimension_numbers = #tpu.dot_dimension_numbers<[1], [0], [0], [1], [0, 0, 1, 1], [], []>} : vector<8x30xf32>, vector<30x120xf32>, vector<8x120xf32> -> vector<8x120xf32>
    %c0_69 = arith.constant 0 : index
    %c0_70 = arith.constant 0 : index
    %c0_71 = arith.constant 0 : index
    %108 = vector.load %arg18[%c0_69, %c0_70, %c0_71] : memref<4x1x120xf32, #tpu.memory_space<vmem>>, vector<1x1x120xf32>
    %109 = vector.shape_cast %108 : vector<1x1x120xf32> to vector<1x120xf32>
    %110 = vector.broadcast %109 : vector<1x120xf32> to vector<8x120xf32>
    %111 = arith.addf %107, %110 : vector<8x120xf32>
    %cst_72 = arith.constant 0.000000e+00 : f32
    %112 = vector.broadcast %cst_72 : f32 to vector<8x120xf32>
    %113 = arith.maximumf %111, %112 : vector<8x120xf32>
    %c0_73 = arith.constant 0 : index
    %c0_74 = arith.constant 0 : index
    %c0_75 = arith.constant 0 : index
    %114 = vector.load %arg19[%c0_73, %c0_74, %c0_75] : memref<4x120x30xf32, #tpu.memory_space<vmem>>, vector<1x120x30xf32>
    %115 = vector.shape_cast %114 : vector<1x120x30xf32> to vector<120x30xf32>
    %cst_76 = arith.constant dense<0.000000e+00> : vector<8x30xf32>
    %116 = tpu.matmul %113, %115, %cst_76 {dimension_numbers = #tpu.dot_dimension_numbers<[1], [0], [0], [1], [0, 0, 1, 1], [], []>} : vector<8x120xf32>, vector<120x30xf32>, vector<8x30xf32> -> vector<8x30xf32>
    %c0_77 = arith.constant 0 : index
    %c0_78 = arith.constant 0 : index
    %c0_79 = arith.constant 0 : index
    %117 = vector.load %arg20[%c0_77, %c0_78, %c0_79] : memref<4x1x30xf32, #tpu.memory_space<vmem>>, vector<1x1x30xf32>
    %118 = vector.shape_cast %117 : vector<1x1x30xf32> to vector<1x30xf32>
    %119 = vector.broadcast %118 : vector<1x30xf32> to vector<8x30xf32>
    %120 = arith.addf %116, %119 : vector<8x30xf32>
    %121 = arith.addf %80, %120 : vector<8x30xf32>
    %c1 = arith.constant 1 : index
    %c0_80 = arith.constant 0 : index
    %c0_81 = arith.constant 0 : index
    %122 = vector.load %arg5[%c1, %c0_80, %c0_81] : memref<4x1x30xf32, #tpu.memory_space<vmem>>, vector<1x1x30xf32>
    %123 = vector.shape_cast %122 : vector<1x1x30xf32> to vector<1x30xf32>
    %c1_82 = arith.constant 1 : index
    %c0_83 = arith.constant 0 : index
    %c0_84 = arith.constant 0 : index
    %124 = vector.load %arg6[%c1_82, %c0_83, %c0_84] : memref<4x1x30xf32, #tpu.memory_space<vmem>>, vector<1x1x30xf32>
    %125 = vector.shape_cast %124 : vector<1x1x30xf32> to vector<1x30xf32>
    %cst_85 = arith.constant dense<0.000000e+00> : vector<8xf32>
    %126 = vector.multi_reduction <add>, %121, %cst_85 [1] : vector<8x30xf32> to vector<8xf32>
    %127 = vector.shape_cast %126 : vector<8xf32> to vector<8x1xf32>
    %cst_86 = arith.constant 3.000000e+01 : f32
    %128 = vector.broadcast %cst_86 : f32 to vector<8x1xf32>
    %129 = arith.divf %127, %128 : vector<8x1xf32>
    %130 = vector.broadcast %129 : vector<8x1xf32> to vector<8x30xf32>
    %131 = arith.subf %121, %130 : vector<8x30xf32>
    %132 = arith.mulf %131, %131 : vector<8x30xf32>
    %cst_87 = arith.constant dense<0.000000e+00> : vector<8xf32>
    %133 = vector.multi_reduction <add>, %132, %cst_87 [1] : vector<8x30xf32> to vector<8xf32>
    %134 = vector.shape_cast %133 : vector<8xf32> to vector<8x1xf32>
    %cst_88 = arith.constant 3.000000e+01 : f32
    %135 = vector.broadcast %cst_88 : f32 to vector<8x1xf32>
    %136 = arith.divf %134, %135 : vector<8x1xf32>
    %cst_89 = arith.constant 9.99999974E-6 : f32
    %137 = vector.broadcast %cst_89 : f32 to vector<8x1xf32>
    %138 = arith.addf %136, %137 : vector<8x1xf32>
    %139 = math.rsqrt %138 : vector<8x1xf32>
    %140 = vector.broadcast %139 : vector<8x1xf32> to vector<8x30xf32>
    %141 = arith.mulf %131, %140 : vector<8x30xf32>
    %142 = vector.broadcast %123 : vector<1x30xf32> to vector<8x30xf32>
    %143 = arith.mulf %141, %142 : vector<8x30xf32>
    %144 = vector.broadcast %125 : vector<1x30xf32> to vector<8x30xf32>
    %145 = arith.addf %143, %144 : vector<8x30xf32>
    %c1_90 = arith.constant 1 : index
    %c0_91 = arith.constant 0 : index
    %c0_92 = arith.constant 0 : index
    %146 = vector.load %arg7[%c1_90, %c0_91, %c0_92] : memref<4x30x30xf32, #tpu.memory_space<vmem>>, vector<1x30x30xf32>
    %147 = vector.shape_cast %146 : vector<1x30x30xf32> to vector<30x30xf32>
    %cst_93 = arith.constant dense<0.000000e+00> : vector<8x30xf32>
    %148 = tpu.matmul %145, %147, %cst_93 {dimension_numbers = #tpu.dot_dimension_numbers<[1], [0], [0], [1], [0, 0, 1, 1], [], []>} : vector<8x30xf32>, vector<30x30xf32>, vector<8x30xf32> -> vector<8x30xf32>
    %c1_94 = arith.constant 1 : index
    %c0_95 = arith.constant 0 : index
    %c0_96 = arith.constant 0 : index
    %149 = vector.load %arg8[%c1_94, %c0_95, %c0_96] : memref<4x1x30xf32, #tpu.memory_space<vmem>>, vector<1x1x30xf32>
    %150 = vector.shape_cast %149 : vector<1x1x30xf32> to vector<1x30xf32>
    %151 = vector.broadcast %150 : vector<1x30xf32> to vector<8x30xf32>
    %152 = arith.addf %148, %151 : vector<8x30xf32>
    %cst_97 = arith.constant 0.182574183 : f32
    %153 = vector.broadcast %cst_97 : f32 to vector<8x30xf32>
    %154 = arith.mulf %152, %153 : vector<8x30xf32>
    %c1_98 = arith.constant 1 : index
    %c0_99 = arith.constant 0 : index
    %c0_100 = arith.constant 0 : index
    %155 = vector.load %arg9[%c1_98, %c0_99, %c0_100] : memref<4x30x30xf32, #tpu.memory_space<vmem>>, vector<1x30x30xf32>
    %156 = vector.shape_cast %155 : vector<1x30x30xf32> to vector<30x30xf32>
    %cst_101 = arith.constant dense<0.000000e+00> : vector<8x30xf32>
    %157 = tpu.matmul %145, %156, %cst_101 {dimension_numbers = #tpu.dot_dimension_numbers<[1], [0], [0], [1], [0, 0, 1, 1], [], []>} : vector<8x30xf32>, vector<30x30xf32>, vector<8x30xf32> -> vector<8x30xf32>
    %c1_102 = arith.constant 1 : index
    %c0_103 = arith.constant 0 : index
    %c0_104 = arith.constant 0 : index
    %158 = vector.load %arg10[%c1_102, %c0_103, %c0_104] : memref<4x1x30xf32, #tpu.memory_space<vmem>>, vector<1x1x30xf32>
    %159 = vector.shape_cast %158 : vector<1x1x30xf32> to vector<1x30xf32>
    %160 = vector.broadcast %159 : vector<1x30xf32> to vector<8x30xf32>
    %161 = arith.addf %157, %160 : vector<8x30xf32>
    %c1_105 = arith.constant 1 : index
    %c0_106 = arith.constant 0 : index
    %c0_107 = arith.constant 0 : index
    %162 = vector.load %arg11[%c1_105, %c0_106, %c0_107] : memref<4x30x30xf32, #tpu.memory_space<vmem>>, vector<1x30x30xf32>
    %163 = vector.shape_cast %162 : vector<1x30x30xf32> to vector<30x30xf32>
    %cst_108 = arith.constant dense<0.000000e+00> : vector<8x30xf32>
    %164 = tpu.matmul %145, %163, %cst_108 {dimension_numbers = #tpu.dot_dimension_numbers<[1], [0], [0], [1], [0, 0, 1, 1], [], []>} : vector<8x30xf32>, vector<30x30xf32>, vector<8x30xf32> -> vector<8x30xf32>
    %c1_109 = arith.constant 1 : index
    %c0_110 = arith.constant 0 : index
    %c0_111 = arith.constant 0 : index
    %165 = vector.load %arg12[%c1_109, %c0_110, %c0_111] : memref<4x1x30xf32, #tpu.memory_space<vmem>>, vector<1x1x30xf32>
    %166 = vector.shape_cast %165 : vector<1x1x30xf32> to vector<1x30xf32>
    %167 = vector.broadcast %166 : vector<1x30xf32> to vector<8x30xf32>
    %168 = arith.addf %164, %167 : vector<8x30xf32>
    %cst_112 = arith.constant dense<0.000000e+00> : vector<8x8xf32>
    %169 = tpu.matmul %154, %161, %cst_112 {dimension_numbers = #tpu.dot_dimension_numbers<[1], [1], [0], [0], [0, 0, 1, 0], [], []>} : vector<8x30xf32>, vector<8x30xf32>, vector<8x8xf32> -> vector<8x8xf32>
    %cst_113 = arith.constant dense<0xFF800000> : vector<8xf32>
    %170 = vector.multi_reduction <maximumf>, %169, %cst_113 [1] : vector<8x8xf32> to vector<8xf32>
    %171 = vector.shape_cast %170 : vector<8xf32> to vector<8x1xf32>
    %172 = vector.broadcast %171 : vector<8x1xf32> to vector<8x8xf32>
    %173 = arith.subf %169, %172 : vector<8x8xf32>
    %174 = math.exp %173 : vector<8x8xf32>
    %cst_114 = arith.constant dense<0.000000e+00> : vector<8xf32>
    %175 = vector.multi_reduction <add>, %174, %cst_114 [1] : vector<8x8xf32> to vector<8xf32>
    %176 = vector.shape_cast %175 : vector<8xf32> to vector<8x1xf32>
    %177 = vector.broadcast %176 : vector<8x1xf32> to vector<8x8xf32>
    %178 = arith.divf %174, %177 : vector<8x8xf32>
    %cst_115 = arith.constant dense<0.000000e+00> : vector<8x30xf32>
    %179 = tpu.matmul %178, %168, %cst_115 {dimension_numbers = #tpu.dot_dimension_numbers<[1], [0], [0], [1], [0, 0, 1, 1], [], []>} : vector<8x8xf32>, vector<8x30xf32>, vector<8x30xf32> -> vector<8x30xf32>
    %c1_116 = arith.constant 1 : index
    %c0_117 = arith.constant 0 : index
    %c0_118 = arith.constant 0 : index
    %180 = vector.load %arg13[%c1_116, %c0_117, %c0_118] : memref<4x30x30xf32, #tpu.memory_space<vmem>>, vector<1x30x30xf32>
    %181 = vector.shape_cast %180 : vector<1x30x30xf32> to vector<30x30xf32>
    %cst_119 = arith.constant dense<0.000000e+00> : vector<8x30xf32>
    %182 = tpu.matmul %179, %181, %cst_119 {dimension_numbers = #tpu.dot_dimension_numbers<[1], [0], [0], [1], [0, 0, 1, 1], [], []>} : vector<8x30xf32>, vector<30x30xf32>, vector<8x30xf32> -> vector<8x30xf32>
    %c1_120 = arith.constant 1 : index
    %c0_121 = arith.constant 0 : index
    %c0_122 = arith.constant 0 : index
    %183 = vector.load %arg14[%c1_120, %c0_121, %c0_122] : memref<4x1x30xf32, #tpu.memory_space<vmem>>, vector<1x1x30xf32>
    %184 = vector.shape_cast %183 : vector<1x1x30xf32> to vector<1x30xf32>
    %185 = vector.broadcast %184 : vector<1x30xf32> to vector<8x30xf32>
    %186 = arith.addf %182, %185 : vector<8x30xf32>
    %187 = arith.addf %121, %186 : vector<8x30xf32>
    %c1_123 = arith.constant 1 : index
    %c0_124 = arith.constant 0 : index
    %c0_125 = arith.constant 0 : index
    %188 = vector.load %arg15[%c1_123, %c0_124, %c0_125] : memref<4x1x30xf32, #tpu.memory_space<vmem>>, vector<1x1x30xf32>
    %189 = vector.shape_cast %188 : vector<1x1x30xf32> to vector<1x30xf32>
    %c1_126 = arith.constant 1 : index
    %c0_127 = arith.constant 0 : index
    %c0_128 = arith.constant 0 : index
    %190 = vector.load %arg16[%c1_126, %c0_127, %c0_128] : memref<4x1x30xf32, #tpu.memory_space<vmem>>, vector<1x1x30xf32>
    %191 = vector.shape_cast %190 : vector<1x1x30xf32> to vector<1x30xf32>
    %cst_129 = arith.constant dense<0.000000e+00> : vector<8xf32>
    %192 = vector.multi_reduction <add>, %187, %cst_129 [1] : vector<8x30xf32> to vector<8xf32>
    %193 = vector.shape_cast %192 : vector<8xf32> to vector<8x1xf32>
    %cst_130 = arith.constant 3.000000e+01 : f32
    %194 = vector.broadcast %cst_130 : f32 to vector<8x1xf32>
    %195 = arith.divf %193, %194 : vector<8x1xf32>
    %196 = vector.broadcast %195 : vector<8x1xf32> to vector<8x30xf32>
    %197 = arith.subf %187, %196 : vector<8x30xf32>
    %198 = arith.mulf %197, %197 : vector<8x30xf32>
    %cst_131 = arith.constant dense<0.000000e+00> : vector<8xf32>
    %199 = vector.multi_reduction <add>, %198, %cst_131 [1] : vector<8x30xf32> to vector<8xf32>
    %200 = vector.shape_cast %199 : vector<8xf32> to vector<8x1xf32>
    %cst_132 = arith.constant 3.000000e+01 : f32
    %201 = vector.broadcast %cst_132 : f32 to vector<8x1xf32>
    %202 = arith.divf %200, %201 : vector<8x1xf32>
    %cst_133 = arith.constant 9.99999974E-6 : f32
    %203 = vector.broadcast %cst_133 : f32 to vector<8x1xf32>
    %204 = arith.addf %202, %203 : vector<8x1xf32>
    %205 = math.rsqrt %204 : vector<8x1xf32>
    %206 = vector.broadcast %205 : vector<8x1xf32> to vector<8x30xf32>
    %207 = arith.mulf %197, %206 : vector<8x30xf32>
    %208 = vector.broadcast %189 : vector<1x30xf32> to vector<8x30xf32>
    %209 = arith.mulf %207, %208 : vector<8x30xf32>
    %210 = vector.broadcast %191 : vector<1x30xf32> to vector<8x30xf32>
    %211 = arith.addf %209, %210 : vector<8x30xf32>
    %c1_134 = arith.constant 1 : index
    %c0_135 = arith.constant 0 : index
    %c0_136 = arith.constant 0 : index
    %212 = vector.load %arg17[%c1_134, %c0_135, %c0_136] : memref<4x30x120xf32, #tpu.memory_space<vmem>>, vector<1x30x120xf32>
    %213 = vector.shape_cast %212 : vector<1x30x120xf32> to vector<30x120xf32>
    %cst_137 = arith.constant dense<0.000000e+00> : vector<8x120xf32>
    %214 = tpu.matmul %211, %213, %cst_137 {dimension_numbers = #tpu.dot_dimension_numbers<[1], [0], [0], [1], [0, 0, 1, 1], [], []>} : vector<8x30xf32>, vector<30x120xf32>, vector<8x120xf32> -> vector<8x120xf32>
    %c1_138 = arith.constant 1 : index
    %c0_139 = arith.constant 0 : index
    %c0_140 = arith.constant 0 : index
    %215 = vector.load %arg18[%c1_138, %c0_139, %c0_140] : memref<4x1x120xf32, #tpu.memory_space<vmem>>, vector<1x1x120xf32>
    %216 = vector.shape_cast %215 : vector<1x1x120xf32> to vector<1x120xf32>
    %217 = vector.broadcast %216 : vector<1x120xf32> to vector<8x120xf32>
    %218 = arith.addf %214, %217 : vector<8x120xf32>
    %cst_141 = arith.constant 0.000000e+00 : f32
    %219 = vector.broadcast %cst_141 : f32 to vector<8x120xf32>
    %220 = arith.maximumf %218, %219 : vector<8x120xf32>
    %c1_142 = arith.constant 1 : index
    %c0_143 = arith.constant 0 : index
    %c0_144 = arith.constant 0 : index
    %221 = vector.load %arg19[%c1_142, %c0_143, %c0_144] : memref<4x120x30xf32, #tpu.memory_space<vmem>>, vector<1x120x30xf32>
    %222 = vector.shape_cast %221 : vector<1x120x30xf32> to vector<120x30xf32>
    %cst_145 = arith.constant dense<0.000000e+00> : vector<8x30xf32>
    %223 = tpu.matmul %220, %222, %cst_145 {dimension_numbers = #tpu.dot_dimension_numbers<[1], [0], [0], [1], [0, 0, 1, 1], [], []>} : vector<8x120xf32>, vector<120x30xf32>, vector<8x30xf32> -> vector<8x30xf32>
    %c1_146 = arith.constant 1 : index
    %c0_147 = arith.constant 0 : index
    %c0_148 = arith.constant 0 : index
    %224 = vector.load %arg20[%c1_146, %c0_147, %c0_148] : memref<4x1x30xf32, #tpu.memory_space<vmem>>, vector<1x1x30xf32>
    %225 = vector.shape_cast %224 : vector<1x1x30xf32> to vector<1x30xf32>
    %226 = vector.broadcast %225 : vector<1x30xf32> to vector<8x30xf32>
    %227 = arith.addf %223, %226 : vector<8x30xf32>
    %228 = arith.addf %187, %227 : vector<8x30xf32>
    %c2 = arith.constant 2 : index
    %c0_149 = arith.constant 0 : index
    %c0_150 = arith.constant 0 : index
    %229 = vector.load %arg5[%c2, %c0_149, %c0_150] : memref<4x1x30xf32, #tpu.memory_space<vmem>>, vector<1x1x30xf32>
    %230 = vector.shape_cast %229 : vector<1x1x30xf32> to vector<1x30xf32>
    %c2_151 = arith.constant 2 : index
    %c0_152 = arith.constant 0 : index
    %c0_153 = arith.constant 0 : index
    %231 = vector.load %arg6[%c2_151, %c0_152, %c0_153] : memref<4x1x30xf32, #tpu.memory_space<vmem>>, vector<1x1x30xf32>
    %232 = vector.shape_cast %231 : vector<1x1x30xf32> to vector<1x30xf32>
    %cst_154 = arith.constant dense<0.000000e+00> : vector<8xf32>
    %233 = vector.multi_reduction <add>, %228, %cst_154 [1] : vector<8x30xf32> to vector<8xf32>
    %234 = vector.shape_cast %233 : vector<8xf32> to vector<8x1xf32>
    %cst_155 = arith.constant 3.000000e+01 : f32
    %235 = vector.broadcast %cst_155 : f32 to vector<8x1xf32>
    %236 = arith.divf %234, %235 : vector<8x1xf32>
    %237 = vector.broadcast %236 : vector<8x1xf32> to vector<8x30xf32>
    %238 = arith.subf %228, %237 : vector<8x30xf32>
    %239 = arith.mulf %238, %238 : vector<8x30xf32>
    %cst_156 = arith.constant dense<0.000000e+00> : vector<8xf32>
    %240 = vector.multi_reduction <add>, %239, %cst_156 [1] : vector<8x30xf32> to vector<8xf32>
    %241 = vector.shape_cast %240 : vector<8xf32> to vector<8x1xf32>
    %cst_157 = arith.constant 3.000000e+01 : f32
    %242 = vector.broadcast %cst_157 : f32 to vector<8x1xf32>
    %243 = arith.divf %241, %242 : vector<8x1xf32>
    %cst_158 = arith.constant 9.99999974E-6 : f32
    %244 = vector.broadcast %cst_158 : f32 to vector<8x1xf32>
    %245 = arith.addf %243, %244 : vector<8x1xf32>
    %246 = math.rsqrt %245 : vector<8x1xf32>
    %247 = vector.broadcast %246 : vector<8x1xf32> to vector<8x30xf32>
    %248 = arith.mulf %238, %247 : vector<8x30xf32>
    %249 = vector.broadcast %230 : vector<1x30xf32> to vector<8x30xf32>
    %250 = arith.mulf %248, %249 : vector<8x30xf32>
    %251 = vector.broadcast %232 : vector<1x30xf32> to vector<8x30xf32>
    %252 = arith.addf %250, %251 : vector<8x30xf32>
    %c2_159 = arith.constant 2 : index
    %c0_160 = arith.constant 0 : index
    %c0_161 = arith.constant 0 : index
    %253 = vector.load %arg7[%c2_159, %c0_160, %c0_161] : memref<4x30x30xf32, #tpu.memory_space<vmem>>, vector<1x30x30xf32>
    %254 = vector.shape_cast %253 : vector<1x30x30xf32> to vector<30x30xf32>
    %cst_162 = arith.constant dense<0.000000e+00> : vector<8x30xf32>
    %255 = tpu.matmul %252, %254, %cst_162 {dimension_numbers = #tpu.dot_dimension_numbers<[1], [0], [0], [1], [0, 0, 1, 1], [], []>} : vector<8x30xf32>, vector<30x30xf32>, vector<8x30xf32> -> vector<8x30xf32>
    %c2_163 = arith.constant 2 : index
    %c0_164 = arith.constant 0 : index
    %c0_165 = arith.constant 0 : index
    %256 = vector.load %arg8[%c2_163, %c0_164, %c0_165] : memref<4x1x30xf32, #tpu.memory_space<vmem>>, vector<1x1x30xf32>
    %257 = vector.shape_cast %256 : vector<1x1x30xf32> to vector<1x30xf32>
    %258 = vector.broadcast %257 : vector<1x30xf32> to vector<8x30xf32>
    %259 = arith.addf %255, %258 : vector<8x30xf32>
    %cst_166 = arith.constant 0.182574183 : f32
    %260 = vector.broadcast %cst_166 : f32 to vector<8x30xf32>
    %261 = arith.mulf %259, %260 : vector<8x30xf32>
    %c2_167 = arith.constant 2 : index
    %c0_168 = arith.constant 0 : index
    %c0_169 = arith.constant 0 : index
    %262 = vector.load %arg9[%c2_167, %c0_168, %c0_169] : memref<4x30x30xf32, #tpu.memory_space<vmem>>, vector<1x30x30xf32>
    %263 = vector.shape_cast %262 : vector<1x30x30xf32> to vector<30x30xf32>
    %cst_170 = arith.constant dense<0.000000e+00> : vector<8x30xf32>
    %264 = tpu.matmul %252, %263, %cst_170 {dimension_numbers = #tpu.dot_dimension_numbers<[1], [0], [0], [1], [0, 0, 1, 1], [], []>} : vector<8x30xf32>, vector<30x30xf32>, vector<8x30xf32> -> vector<8x30xf32>
    %c2_171 = arith.constant 2 : index
    %c0_172 = arith.constant 0 : index
    %c0_173 = arith.constant 0 : index
    %265 = vector.load %arg10[%c2_171, %c0_172, %c0_173] : memref<4x1x30xf32, #tpu.memory_space<vmem>>, vector<1x1x30xf32>
    %266 = vector.shape_cast %265 : vector<1x1x30xf32> to vector<1x30xf32>
    %267 = vector.broadcast %266 : vector<1x30xf32> to vector<8x30xf32>
    %268 = arith.addf %264, %267 : vector<8x30xf32>
    %c2_174 = arith.constant 2 : index
    %c0_175 = arith.constant 0 : index
    %c0_176 = arith.constant 0 : index
    %269 = vector.load %arg11[%c2_174, %c0_175, %c0_176] : memref<4x30x30xf32, #tpu.memory_space<vmem>>, vector<1x30x30xf32>
    %270 = vector.shape_cast %269 : vector<1x30x30xf32> to vector<30x30xf32>
    %cst_177 = arith.constant dense<0.000000e+00> : vector<8x30xf32>
    %271 = tpu.matmul %252, %270, %cst_177 {dimension_numbers = #tpu.dot_dimension_numbers<[1], [0], [0], [1], [0, 0, 1, 1], [], []>} : vector<8x30xf32>, vector<30x30xf32>, vector<8x30xf32> -> vector<8x30xf32>
    %c2_178 = arith.constant 2 : index
    %c0_179 = arith.constant 0 : index
    %c0_180 = arith.constant 0 : index
    %272 = vector.load %arg12[%c2_178, %c0_179, %c0_180] : memref<4x1x30xf32, #tpu.memory_space<vmem>>, vector<1x1x30xf32>
    %273 = vector.shape_cast %272 : vector<1x1x30xf32> to vector<1x30xf32>
    %274 = vector.broadcast %273 : vector<1x30xf32> to vector<8x30xf32>
    %275 = arith.addf %271, %274 : vector<8x30xf32>
    %cst_181 = arith.constant dense<0.000000e+00> : vector<8x8xf32>
    %276 = tpu.matmul %261, %268, %cst_181 {dimension_numbers = #tpu.dot_dimension_numbers<[1], [1], [0], [0], [0, 0, 1, 0], [], []>} : vector<8x30xf32>, vector<8x30xf32>, vector<8x8xf32> -> vector<8x8xf32>
    %cst_182 = arith.constant dense<0xFF800000> : vector<8xf32>
    %277 = vector.multi_reduction <maximumf>, %276, %cst_182 [1] : vector<8x8xf32> to vector<8xf32>
    %278 = vector.shape_cast %277 : vector<8xf32> to vector<8x1xf32>
    %279 = vector.broadcast %278 : vector<8x1xf32> to vector<8x8xf32>
    %280 = arith.subf %276, %279 : vector<8x8xf32>
    %281 = math.exp %280 : vector<8x8xf32>
    %cst_183 = arith.constant dense<0.000000e+00> : vector<8xf32>
    %282 = vector.multi_reduction <add>, %281, %cst_183 [1] : vector<8x8xf32> to vector<8xf32>
    %283 = vector.shape_cast %282 : vector<8xf32> to vector<8x1xf32>
    %284 = vector.broadcast %283 : vector<8x1xf32> to vector<8x8xf32>
    %285 = arith.divf %281, %284 : vector<8x8xf32>
    %cst_184 = arith.constant dense<0.000000e+00> : vector<8x30xf32>
    %286 = tpu.matmul %285, %275, %cst_184 {dimension_numbers = #tpu.dot_dimension_numbers<[1], [0], [0], [1], [0, 0, 1, 1], [], []>} : vector<8x8xf32>, vector<8x30xf32>, vector<8x30xf32> -> vector<8x30xf32>
    %c2_185 = arith.constant 2 : index
    %c0_186 = arith.constant 0 : index
    %c0_187 = arith.constant 0 : index
    %287 = vector.load %arg13[%c2_185, %c0_186, %c0_187] : memref<4x30x30xf32, #tpu.memory_space<vmem>>, vector<1x30x30xf32>
    %288 = vector.shape_cast %287 : vector<1x30x30xf32> to vector<30x30xf32>
    %cst_188 = arith.constant dense<0.000000e+00> : vector<8x30xf32>
    %289 = tpu.matmul %286, %288, %cst_188 {dimension_numbers = #tpu.dot_dimension_numbers<[1], [0], [0], [1], [0, 0, 1, 1], [], []>} : vector<8x30xf32>, vector<30x30xf32>, vector<8x30xf32> -> vector<8x30xf32>
    %c2_189 = arith.constant 2 : index
    %c0_190 = arith.constant 0 : index
    %c0_191 = arith.constant 0 : index
    %290 = vector.load %arg14[%c2_189, %c0_190, %c0_191] : memref<4x1x30xf32, #tpu.memory_space<vmem>>, vector<1x1x30xf32>
    %291 = vector.shape_cast %290 : vector<1x1x30xf32> to vector<1x30xf32>
    %292 = vector.broadcast %291 : vector<1x30xf32> to vector<8x30xf32>
    %293 = arith.addf %289, %292 : vector<8x30xf32>
    %294 = arith.addf %228, %293 : vector<8x30xf32>
    %c2_192 = arith.constant 2 : index
    %c0_193 = arith.constant 0 : index
    %c0_194 = arith.constant 0 : index
    %295 = vector.load %arg15[%c2_192, %c0_193, %c0_194] : memref<4x1x30xf32, #tpu.memory_space<vmem>>, vector<1x1x30xf32>
    %296 = vector.shape_cast %295 : vector<1x1x30xf32> to vector<1x30xf32>
    %c2_195 = arith.constant 2 : index
    %c0_196 = arith.constant 0 : index
    %c0_197 = arith.constant 0 : index
    %297 = vector.load %arg16[%c2_195, %c0_196, %c0_197] : memref<4x1x30xf32, #tpu.memory_space<vmem>>, vector<1x1x30xf32>
    %298 = vector.shape_cast %297 : vector<1x1x30xf32> to vector<1x30xf32>
    %cst_198 = arith.constant dense<0.000000e+00> : vector<8xf32>
    %299 = vector.multi_reduction <add>, %294, %cst_198 [1] : vector<8x30xf32> to vector<8xf32>
    %300 = vector.shape_cast %299 : vector<8xf32> to vector<8x1xf32>
    %cst_199 = arith.constant 3.000000e+01 : f32
    %301 = vector.broadcast %cst_199 : f32 to vector<8x1xf32>
    %302 = arith.divf %300, %301 : vector<8x1xf32>
    %303 = vector.broadcast %302 : vector<8x1xf32> to vector<8x30xf32>
    %304 = arith.subf %294, %303 : vector<8x30xf32>
    %305 = arith.mulf %304, %304 : vector<8x30xf32>
    %cst_200 = arith.constant dense<0.000000e+00> : vector<8xf32>
    %306 = vector.multi_reduction <add>, %305, %cst_200 [1] : vector<8x30xf32> to vector<8xf32>
    %307 = vector.shape_cast %306 : vector<8xf32> to vector<8x1xf32>
    %cst_201 = arith.constant 3.000000e+01 : f32
    %308 = vector.broadcast %cst_201 : f32 to vector<8x1xf32>
    %309 = arith.divf %307, %308 : vector<8x1xf32>
    %cst_202 = arith.constant 9.99999974E-6 : f32
    %310 = vector.broadcast %cst_202 : f32 to vector<8x1xf32>
    %311 = arith.addf %309, %310 : vector<8x1xf32>
    %312 = math.rsqrt %311 : vector<8x1xf32>
    %313 = vector.broadcast %312 : vector<8x1xf32> to vector<8x30xf32>
    %314 = arith.mulf %304, %313 : vector<8x30xf32>
    %315 = vector.broadcast %296 : vector<1x30xf32> to vector<8x30xf32>
    %316 = arith.mulf %314, %315 : vector<8x30xf32>
    %317 = vector.broadcast %298 : vector<1x30xf32> to vector<8x30xf32>
    %318 = arith.addf %316, %317 : vector<8x30xf32>
    %c2_203 = arith.constant 2 : index
    %c0_204 = arith.constant 0 : index
    %c0_205 = arith.constant 0 : index
    %319 = vector.load %arg17[%c2_203, %c0_204, %c0_205] : memref<4x30x120xf32, #tpu.memory_space<vmem>>, vector<1x30x120xf32>
    %320 = vector.shape_cast %319 : vector<1x30x120xf32> to vector<30x120xf32>
    %cst_206 = arith.constant dense<0.000000e+00> : vector<8x120xf32>
    %321 = tpu.matmul %318, %320, %cst_206 {dimension_numbers = #tpu.dot_dimension_numbers<[1], [0], [0], [1], [0, 0, 1, 1], [], []>} : vector<8x30xf32>, vector<30x120xf32>, vector<8x120xf32> -> vector<8x120xf32>
    %c2_207 = arith.constant 2 : index
    %c0_208 = arith.constant 0 : index
    %c0_209 = arith.constant 0 : index
    %322 = vector.load %arg18[%c2_207, %c0_208, %c0_209] : memref<4x1x120xf32, #tpu.memory_space<vmem>>, vector<1x1x120xf32>
    %323 = vector.shape_cast %322 : vector<1x1x120xf32> to vector<1x120xf32>
    %324 = vector.broadcast %323 : vector<1x120xf32> to vector<8x120xf32>
    %325 = arith.addf %321, %324 : vector<8x120xf32>
    %cst_210 = arith.constant 0.000000e+00 : f32
    %326 = vector.broadcast %cst_210 : f32 to vector<8x120xf32>
    %327 = arith.maximumf %325, %326 : vector<8x120xf32>
    %c2_211 = arith.constant 2 : index
    %c0_212 = arith.constant 0 : index
    %c0_213 = arith.constant 0 : index
    %328 = vector.load %arg19[%c2_211, %c0_212, %c0_213] : memref<4x120x30xf32, #tpu.memory_space<vmem>>, vector<1x120x30xf32>
    %329 = vector.shape_cast %328 : vector<1x120x30xf32> to vector<120x30xf32>
    %cst_214 = arith.constant dense<0.000000e+00> : vector<8x30xf32>
    %330 = tpu.matmul %327, %329, %cst_214 {dimension_numbers = #tpu.dot_dimension_numbers<[1], [0], [0], [1], [0, 0, 1, 1], [], []>} : vector<8x120xf32>, vector<120x30xf32>, vector<8x30xf32> -> vector<8x30xf32>
    %c2_215 = arith.constant 2 : index
    %c0_216 = arith.constant 0 : index
    %c0_217 = arith.constant 0 : index
    %331 = vector.load %arg20[%c2_215, %c0_216, %c0_217] : memref<4x1x30xf32, #tpu.memory_space<vmem>>, vector<1x1x30xf32>
    %332 = vector.shape_cast %331 : vector<1x1x30xf32> to vector<1x30xf32>
    %333 = vector.broadcast %332 : vector<1x30xf32> to vector<8x30xf32>
    %334 = arith.addf %330, %333 : vector<8x30xf32>
    %335 = arith.addf %294, %334 : vector<8x30xf32>
    %c3 = arith.constant 3 : index
    %c0_218 = arith.constant 0 : index
    %c0_219 = arith.constant 0 : index
    %336 = vector.load %arg5[%c3, %c0_218, %c0_219] : memref<4x1x30xf32, #tpu.memory_space<vmem>>, vector<1x1x30xf32>
    %337 = vector.shape_cast %336 : vector<1x1x30xf32> to vector<1x30xf32>
    %c3_220 = arith.constant 3 : index
    %c0_221 = arith.constant 0 : index
    %c0_222 = arith.constant 0 : index
    %338 = vector.load %arg6[%c3_220, %c0_221, %c0_222] : memref<4x1x30xf32, #tpu.memory_space<vmem>>, vector<1x1x30xf32>
    %339 = vector.shape_cast %338 : vector<1x1x30xf32> to vector<1x30xf32>
    %cst_223 = arith.constant dense<0.000000e+00> : vector<8xf32>
    %340 = vector.multi_reduction <add>, %335, %cst_223 [1] : vector<8x30xf32> to vector<8xf32>
    %341 = vector.shape_cast %340 : vector<8xf32> to vector<8x1xf32>
    %cst_224 = arith.constant 3.000000e+01 : f32
    %342 = vector.broadcast %cst_224 : f32 to vector<8x1xf32>
    %343 = arith.divf %341, %342 : vector<8x1xf32>
    %344 = vector.broadcast %343 : vector<8x1xf32> to vector<8x30xf32>
    %345 = arith.subf %335, %344 : vector<8x30xf32>
    %346 = arith.mulf %345, %345 : vector<8x30xf32>
    %cst_225 = arith.constant dense<0.000000e+00> : vector<8xf32>
    %347 = vector.multi_reduction <add>, %346, %cst_225 [1] : vector<8x30xf32> to vector<8xf32>
    %348 = vector.shape_cast %347 : vector<8xf32> to vector<8x1xf32>
    %cst_226 = arith.constant 3.000000e+01 : f32
    %349 = vector.broadcast %cst_226 : f32 to vector<8x1xf32>
    %350 = arith.divf %348, %349 : vector<8x1xf32>
    %cst_227 = arith.constant 9.99999974E-6 : f32
    %351 = vector.broadcast %cst_227 : f32 to vector<8x1xf32>
    %352 = arith.addf %350, %351 : vector<8x1xf32>
    %353 = math.rsqrt %352 : vector<8x1xf32>
    %354 = vector.broadcast %353 : vector<8x1xf32> to vector<8x30xf32>
    %355 = arith.mulf %345, %354 : vector<8x30xf32>
    %356 = vector.broadcast %337 : vector<1x30xf32> to vector<8x30xf32>
    %357 = arith.mulf %355, %356 : vector<8x30xf32>
    %358 = vector.broadcast %339 : vector<1x30xf32> to vector<8x30xf32>
    %359 = arith.addf %357, %358 : vector<8x30xf32>
    %c3_228 = arith.constant 3 : index
    %c0_229 = arith.constant 0 : index
    %c0_230 = arith.constant 0 : index
    %360 = vector.load %arg7[%c3_228, %c0_229, %c0_230] : memref<4x30x30xf32, #tpu.memory_space<vmem>>, vector<1x30x30xf32>
    %361 = vector.shape_cast %360 : vector<1x30x30xf32> to vector<30x30xf32>
    %cst_231 = arith.constant dense<0.000000e+00> : vector<8x30xf32>
    %362 = tpu.matmul %359, %361, %cst_231 {dimension_numbers = #tpu.dot_dimension_numbers<[1], [0], [0], [1], [0, 0, 1, 1], [], []>} : vector<8x30xf32>, vector<30x30xf32>, vector<8x30xf32> -> vector<8x30xf32>
    %c3_232 = arith.constant 3 : index
    %c0_233 = arith.constant 0 : index
    %c0_234 = arith.constant 0 : index
    %363 = vector.load %arg8[%c3_232, %c0_233, %c0_234] : memref<4x1x30xf32, #tpu.memory_space<vmem>>, vector<1x1x30xf32>
    %364 = vector.shape_cast %363 : vector<1x1x30xf32> to vector<1x30xf32>
    %365 = vector.broadcast %364 : vector<1x30xf32> to vector<8x30xf32>
    %366 = arith.addf %362, %365 : vector<8x30xf32>
    %cst_235 = arith.constant 0.182574183 : f32
    %367 = vector.broadcast %cst_235 : f32 to vector<8x30xf32>
    %368 = arith.mulf %366, %367 : vector<8x30xf32>
    %c3_236 = arith.constant 3 : index
    %c0_237 = arith.constant 0 : index
    %c0_238 = arith.constant 0 : index
    %369 = vector.load %arg9[%c3_236, %c0_237, %c0_238] : memref<4x30x30xf32, #tpu.memory_space<vmem>>, vector<1x30x30xf32>
    %370 = vector.shape_cast %369 : vector<1x30x30xf32> to vector<30x30xf32>
    %cst_239 = arith.constant dense<0.000000e+00> : vector<8x30xf32>
    %371 = tpu.matmul %359, %370, %cst_239 {dimension_numbers = #tpu.dot_dimension_numbers<[1], [0], [0], [1], [0, 0, 1, 1], [], []>} : vector<8x30xf32>, vector<30x30xf32>, vector<8x30xf32> -> vector<8x30xf32>
    %c3_240 = arith.constant 3 : index
    %c0_241 = arith.constant 0 : index
    %c0_242 = arith.constant 0 : index
    %372 = vector.load %arg10[%c3_240, %c0_241, %c0_242] : memref<4x1x30xf32, #tpu.memory_space<vmem>>, vector<1x1x30xf32>
    %373 = vector.shape_cast %372 : vector<1x1x30xf32> to vector<1x30xf32>
    %374 = vector.broadcast %373 : vector<1x30xf32> to vector<8x30xf32>
    %375 = arith.addf %371, %374 : vector<8x30xf32>
    %c3_243 = arith.constant 3 : index
    %c0_244 = arith.constant 0 : index
    %c0_245 = arith.constant 0 : index
    %376 = vector.load %arg11[%c3_243, %c0_244, %c0_245] : memref<4x30x30xf32, #tpu.memory_space<vmem>>, vector<1x30x30xf32>
    %377 = vector.shape_cast %376 : vector<1x30x30xf32> to vector<30x30xf32>
    %cst_246 = arith.constant dense<0.000000e+00> : vector<8x30xf32>
    %378 = tpu.matmul %359, %377, %cst_246 {dimension_numbers = #tpu.dot_dimension_numbers<[1], [0], [0], [1], [0, 0, 1, 1], [], []>} : vector<8x30xf32>, vector<30x30xf32>, vector<8x30xf32> -> vector<8x30xf32>
    %c3_247 = arith.constant 3 : index
    %c0_248 = arith.constant 0 : index
    %c0_249 = arith.constant 0 : index
    %379 = vector.load %arg12[%c3_247, %c0_248, %c0_249] : memref<4x1x30xf32, #tpu.memory_space<vmem>>, vector<1x1x30xf32>
    %380 = vector.shape_cast %379 : vector<1x1x30xf32> to vector<1x30xf32>
    %381 = vector.broadcast %380 : vector<1x30xf32> to vector<8x30xf32>
    %382 = arith.addf %378, %381 : vector<8x30xf32>
    %cst_250 = arith.constant dense<0.000000e+00> : vector<8x8xf32>
    %383 = tpu.matmul %368, %375, %cst_250 {dimension_numbers = #tpu.dot_dimension_numbers<[1], [1], [0], [0], [0, 0, 1, 0], [], []>} : vector<8x30xf32>, vector<8x30xf32>, vector<8x8xf32> -> vector<8x8xf32>
    %cst_251 = arith.constant dense<0xFF800000> : vector<8xf32>
    %384 = vector.multi_reduction <maximumf>, %383, %cst_251 [1] : vector<8x8xf32> to vector<8xf32>
    %385 = vector.shape_cast %384 : vector<8xf32> to vector<8x1xf32>
    %386 = vector.broadcast %385 : vector<8x1xf32> to vector<8x8xf32>
    %387 = arith.subf %383, %386 : vector<8x8xf32>
    %388 = math.exp %387 : vector<8x8xf32>
    %cst_252 = arith.constant dense<0.000000e+00> : vector<8xf32>
    %389 = vector.multi_reduction <add>, %388, %cst_252 [1] : vector<8x8xf32> to vector<8xf32>
    %390 = vector.shape_cast %389 : vector<8xf32> to vector<8x1xf32>
    %391 = vector.broadcast %390 : vector<8x1xf32> to vector<8x8xf32>
    %392 = arith.divf %388, %391 : vector<8x8xf32>
    %cst_253 = arith.constant dense<0.000000e+00> : vector<8x30xf32>
    %393 = tpu.matmul %392, %382, %cst_253 {dimension_numbers = #tpu.dot_dimension_numbers<[1], [0], [0], [1], [0, 0, 1, 1], [], []>} : vector<8x8xf32>, vector<8x30xf32>, vector<8x30xf32> -> vector<8x30xf32>
    %c3_254 = arith.constant 3 : index
    %c0_255 = arith.constant 0 : index
    %c0_256 = arith.constant 0 : index
    %394 = vector.load %arg13[%c3_254, %c0_255, %c0_256] : memref<4x30x30xf32, #tpu.memory_space<vmem>>, vector<1x30x30xf32>
    %395 = vector.shape_cast %394 : vector<1x30x30xf32> to vector<30x30xf32>
    %cst_257 = arith.constant dense<0.000000e+00> : vector<8x30xf32>
    %396 = tpu.matmul %393, %395, %cst_257 {dimension_numbers = #tpu.dot_dimension_numbers<[1], [0], [0], [1], [0, 0, 1, 1], [], []>} : vector<8x30xf32>, vector<30x30xf32>, vector<8x30xf32> -> vector<8x30xf32>
    %c3_258 = arith.constant 3 : index
    %c0_259 = arith.constant 0 : index
    %c0_260 = arith.constant 0 : index
    %397 = vector.load %arg14[%c3_258, %c0_259, %c0_260] : memref<4x1x30xf32, #tpu.memory_space<vmem>>, vector<1x1x30xf32>
    %398 = vector.shape_cast %397 : vector<1x1x30xf32> to vector<1x30xf32>
    %399 = vector.broadcast %398 : vector<1x30xf32> to vector<8x30xf32>
    %400 = arith.addf %396, %399 : vector<8x30xf32>
    %401 = arith.addf %335, %400 : vector<8x30xf32>
    %c3_261 = arith.constant 3 : index
    %c0_262 = arith.constant 0 : index
    %c0_263 = arith.constant 0 : index
    %402 = vector.load %arg15[%c3_261, %c0_262, %c0_263] : memref<4x1x30xf32, #tpu.memory_space<vmem>>, vector<1x1x30xf32>
    %403 = vector.shape_cast %402 : vector<1x1x30xf32> to vector<1x30xf32>
    %c3_264 = arith.constant 3 : index
    %c0_265 = arith.constant 0 : index
    %c0_266 = arith.constant 0 : index
    %404 = vector.load %arg16[%c3_264, %c0_265, %c0_266] : memref<4x1x30xf32, #tpu.memory_space<vmem>>, vector<1x1x30xf32>
    %405 = vector.shape_cast %404 : vector<1x1x30xf32> to vector<1x30xf32>
    %cst_267 = arith.constant dense<0.000000e+00> : vector<8xf32>
    %406 = vector.multi_reduction <add>, %401, %cst_267 [1] : vector<8x30xf32> to vector<8xf32>
    %407 = vector.shape_cast %406 : vector<8xf32> to vector<8x1xf32>
    %cst_268 = arith.constant 3.000000e+01 : f32
    %408 = vector.broadcast %cst_268 : f32 to vector<8x1xf32>
    %409 = arith.divf %407, %408 : vector<8x1xf32>
    %410 = vector.broadcast %409 : vector<8x1xf32> to vector<8x30xf32>
    %411 = arith.subf %401, %410 : vector<8x30xf32>
    %412 = arith.mulf %411, %411 : vector<8x30xf32>
    %cst_269 = arith.constant dense<0.000000e+00> : vector<8xf32>
    %413 = vector.multi_reduction <add>, %412, %cst_269 [1] : vector<8x30xf32> to vector<8xf32>
    %414 = vector.shape_cast %413 : vector<8xf32> to vector<8x1xf32>
    %cst_270 = arith.constant 3.000000e+01 : f32
    %415 = vector.broadcast %cst_270 : f32 to vector<8x1xf32>
    %416 = arith.divf %414, %415 : vector<8x1xf32>
    %cst_271 = arith.constant 9.99999974E-6 : f32
    %417 = vector.broadcast %cst_271 : f32 to vector<8x1xf32>
    %418 = arith.addf %416, %417 : vector<8x1xf32>
    %419 = math.rsqrt %418 : vector<8x1xf32>
    %420 = vector.broadcast %419 : vector<8x1xf32> to vector<8x30xf32>
    %421 = arith.mulf %411, %420 : vector<8x30xf32>
    %422 = vector.broadcast %403 : vector<1x30xf32> to vector<8x30xf32>
    %423 = arith.mulf %421, %422 : vector<8x30xf32>
    %424 = vector.broadcast %405 : vector<1x30xf32> to vector<8x30xf32>
    %425 = arith.addf %423, %424 : vector<8x30xf32>
    %c3_272 = arith.constant 3 : index
    %c0_273 = arith.constant 0 : index
    %c0_274 = arith.constant 0 : index
    %426 = vector.load %arg17[%c3_272, %c0_273, %c0_274] : memref<4x30x120xf32, #tpu.memory_space<vmem>>, vector<1x30x120xf32>
    %427 = vector.shape_cast %426 : vector<1x30x120xf32> to vector<30x120xf32>
    %cst_275 = arith.constant dense<0.000000e+00> : vector<8x120xf32>
    %428 = tpu.matmul %425, %427, %cst_275 {dimension_numbers = #tpu.dot_dimension_numbers<[1], [0], [0], [1], [0, 0, 1, 1], [], []>} : vector<8x30xf32>, vector<30x120xf32>, vector<8x120xf32> -> vector<8x120xf32>
    %c3_276 = arith.constant 3 : index
    %c0_277 = arith.constant 0 : index
    %c0_278 = arith.constant 0 : index
    %429 = vector.load %arg18[%c3_276, %c0_277, %c0_278] : memref<4x1x120xf32, #tpu.memory_space<vmem>>, vector<1x1x120xf32>
    %430 = vector.shape_cast %429 : vector<1x1x120xf32> to vector<1x120xf32>
    %431 = vector.broadcast %430 : vector<1x120xf32> to vector<8x120xf32>
    %432 = arith.addf %428, %431 : vector<8x120xf32>
    %cst_279 = arith.constant 0.000000e+00 : f32
    %433 = vector.broadcast %cst_279 : f32 to vector<8x120xf32>
    %434 = arith.maximumf %432, %433 : vector<8x120xf32>
    %c3_280 = arith.constant 3 : index
    %c0_281 = arith.constant 0 : index
    %c0_282 = arith.constant 0 : index
    %435 = vector.load %arg19[%c3_280, %c0_281, %c0_282] : memref<4x120x30xf32, #tpu.memory_space<vmem>>, vector<1x120x30xf32>
    %436 = vector.shape_cast %435 : vector<1x120x30xf32> to vector<120x30xf32>
    %cst_283 = arith.constant dense<0.000000e+00> : vector<8x30xf32>
    %437 = tpu.matmul %434, %436, %cst_283 {dimension_numbers = #tpu.dot_dimension_numbers<[1], [0], [0], [1], [0, 0, 1, 1], [], []>} : vector<8x120xf32>, vector<120x30xf32>, vector<8x30xf32> -> vector<8x30xf32>
    %c3_284 = arith.constant 3 : index
    %c0_285 = arith.constant 0 : index
    %c0_286 = arith.constant 0 : index
    %438 = vector.load %arg20[%c3_284, %c0_285, %c0_286] : memref<4x1x30xf32, #tpu.memory_space<vmem>>, vector<1x1x30xf32>
    %439 = vector.shape_cast %438 : vector<1x1x30xf32> to vector<1x30xf32>
    %440 = vector.broadcast %439 : vector<1x30xf32> to vector<8x30xf32>
    %441 = arith.addf %437, %440 : vector<8x30xf32>
    %442 = arith.addf %401, %441 : vector<8x30xf32>
    %c0_287 = arith.constant 0 : index
    %c0_288 = arith.constant 0 : index
    %443 = vector.load %arg21[%c0_287, %c0_288] : memref<1x30xf32, #tpu.memory_space<vmem>>, vector<1x30xf32>
    %c0_289 = arith.constant 0 : index
    %c0_290 = arith.constant 0 : index
    %444 = vector.load %arg22[%c0_289, %c0_290] : memref<1x30xf32, #tpu.memory_space<vmem>>, vector<1x30xf32>
    %cst_291 = arith.constant dense<0.000000e+00> : vector<8xf32>
    %445 = vector.multi_reduction <add>, %442, %cst_291 [1] : vector<8x30xf32> to vector<8xf32>
    %446 = vector.shape_cast %445 : vector<8xf32> to vector<8x1xf32>
    %cst_292 = arith.constant 3.000000e+01 : f32
    %447 = vector.broadcast %cst_292 : f32 to vector<8x1xf32>
    %448 = arith.divf %446, %447 : vector<8x1xf32>
    %449 = vector.broadcast %448 : vector<8x1xf32> to vector<8x30xf32>
    %450 = arith.subf %442, %449 : vector<8x30xf32>
    %451 = arith.mulf %450, %450 : vector<8x30xf32>
    %cst_293 = arith.constant dense<0.000000e+00> : vector<8xf32>
    %452 = vector.multi_reduction <add>, %451, %cst_293 [1] : vector<8x30xf32> to vector<8xf32>
    %453 = vector.shape_cast %452 : vector<8xf32> to vector<8x1xf32>
    %cst_294 = arith.constant 3.000000e+01 : f32
    %454 = vector.broadcast %cst_294 : f32 to vector<8x1xf32>
    %455 = arith.divf %453, %454 : vector<8x1xf32>
    %cst_295 = arith.constant 9.99999974E-6 : f32
    %456 = vector.broadcast %cst_295 : f32 to vector<8x1xf32>
    %457 = arith.addf %455, %456 : vector<8x1xf32>
    %458 = math.rsqrt %457 : vector<8x1xf32>
    %459 = vector.broadcast %458 : vector<8x1xf32> to vector<8x30xf32>
    %460 = arith.mulf %450, %459 : vector<8x30xf32>
    %461 = vector.broadcast %443 : vector<1x30xf32> to vector<8x30xf32>
    %462 = arith.mulf %460, %461 : vector<8x30xf32>
    %463 = vector.broadcast %444 : vector<1x30xf32> to vector<8x30xf32>
    %464 = arith.addf %462, %463 : vector<8x30xf32>
    %465 = vector.extract_strided_slice %464 {offsets = [7, 0], sizes = [1, 30], strides = [1, 1]} : vector<8x30xf32> to vector<1x30xf32>
    %c0_296 = arith.constant 0 : index
    %c0_297 = arith.constant 0 : index
    %466 = vector.load %arg23[%c0_296, %c0_297] : memref<30x30xf32, #tpu.memory_space<vmem>>, vector<30x30xf32>
    %cst_298 = arith.constant dense<0.000000e+00> : vector<1x30xf32>
    %467 = tpu.matmul %465, %466, %cst_298 {dimension_numbers = #tpu.dot_dimension_numbers<[1], [0], [0], [1], [0, 0, 1, 1], [], []>} : vector<1x30xf32>, vector<30x30xf32>, vector<1x30xf32> -> vector<1x30xf32>
    %c0_299 = arith.constant 0 : index
    %c0_300 = arith.constant 0 : index
    %468 = vector.load %arg24[%c0_299, %c0_300] : memref<1x30xf32, #tpu.memory_space<vmem>>, vector<1x30xf32>
    %469 = arith.addf %467, %468 : vector<1x30xf32>
    %cst_301 = arith.constant 0.000000e+00 : f32
    %470 = vector.broadcast %cst_301 : f32 to vector<1x30xf32>
    %471 = arith.maximumf %469, %470 : vector<1x30xf32>
    %c0_302 = arith.constant 0 : index
    %c0_303 = arith.constant 0 : index
    %472 = vector.load %arg25[%c0_302, %c0_303] : memref<30x30xf32, #tpu.memory_space<vmem>>, vector<30x30xf32>
    %cst_304 = arith.constant dense<0.000000e+00> : vector<1x30xf32>
    %473 = tpu.matmul %471, %472, %cst_304 {dimension_numbers = #tpu.dot_dimension_numbers<[1], [0], [0], [1], [0, 0, 1, 1], [], []>} : vector<1x30xf32>, vector<30x30xf32>, vector<1x30xf32> -> vector<1x30xf32>
    %c0_305 = arith.constant 0 : index
    %c0_306 = arith.constant 0 : index
    %474 = vector.load %arg26[%c0_305, %c0_306] : memref<1x30xf32, #tpu.memory_space<vmem>>, vector<1x30xf32>
    %475 = arith.addf %473, %474 : vector<1x30xf32>
    %476 = arith.addf %475, %465 : vector<1x30xf32>
    %c0_307 = arith.constant 0 : index
    %c0_308 = arith.constant 0 : index
    %477 = vector.load %arg27[%c0_307, %c0_308] : memref<30x30xf32, #tpu.memory_space<vmem>>, vector<30x30xf32>
    %cst_309 = arith.constant dense<0.000000e+00> : vector<1x30xf32>
    %478 = tpu.matmul %476, %477, %cst_309 {dimension_numbers = #tpu.dot_dimension_numbers<[1], [0], [0], [1], [0, 0, 1, 1], [], []>} : vector<1x30xf32>, vector<30x30xf32>, vector<1x30xf32> -> vector<1x30xf32>
    %c0_310 = arith.constant 0 : index
    %c0_311 = arith.constant 0 : index
    %479 = vector.load %arg28[%c0_310, %c0_311] : memref<1x30xf32, #tpu.memory_space<vmem>>, vector<1x30xf32>
    %480 = arith.addf %478, %479 : vector<1x30xf32>
    %c0_312 = arith.constant 0 : index
    %c0_313 = arith.constant 0 : index
    %481 = vector.load %arg29[%c0_312, %c0_313] : memref<1x30xf32, #tpu.memory_space<vmem>>, vector<1x30xf32>
    tpu.vector_store %arg29[%c0_312, %c0_313], %480 {strides = array<i32>} : memref<1x30xf32, #tpu.memory_space<vmem>>, vector<1x30xf32>,
    return
  }
}

</mosaic_0001>

<llo_original>
// kernel: tpu_custom_call.1
$region0: #{tpu_custom_call.1}
  #allocation0 [shape = 'u32[]', space=smem, size = 0x4, offset = 0x4, fixed_abs, tag = 'smem constant byte address 0x4 - core index']
  #allocation1 [shape = 'u32[72,128]{1,0:T(1,128)}', space=vmem, size = 0x9000, scoped, tag = 'internal scratch']
  %s0 = inlined_call_operand.smem [shape: u32[30], index: -1, kind: input, shape index: {}]
  %s1 = sld [smem:[%s0]]
  %s2 = scalar_lea.smem %s0, 1
  %s3 = sld [smem:[%s2]]
  %s4 = scalar_lea.smem %s0, 2
  %s5 = sld [smem:[%s4]]
  %s6 = scalar_lea.smem %s0, 3
  %s7 = sld [smem:[%s6]]
  %s8 = scalar_lea.smem %s0, 4
  %s9 = sld [smem:[%s8]]
  %s10 = scalar_lea.smem %s0, 5
  %s11 = sld [smem:[%s10]]
  %s12 = scalar_lea.smem %s0, 6
  %s13 = sld [smem:[%s12]]
  %s14 = scalar_lea.smem %s0, 7
  %s15 = sld [smem:[%s14]]
  %s16 = scalar_lea.smem %s0, 8
  %s17 = sld [smem:[%s16]]
  %s18 = scalar_lea.smem %s0, 9
  %s19 = sld [smem:[%s18]]
  %s20 = scalar_lea.smem %s0, 10
  %s21 = sld [smem:[%s20]]
  %s22 = scalar_lea.smem %s0, 11
  %s23 = sld [smem:[%s22]]
  %s24 = scalar_lea.smem %s0, 12
  %s25 = sld [smem:[%s24]]
  %s26 = scalar_lea.smem %s0, 13
  %s27 = sld [smem:[%s26]]
  %s28 = scalar_lea.smem %s0, 14
  %s29 = sld [smem:[%s28]]
  %s30 = scalar_lea.smem %s0, 15
  %s31 = sld [smem:[%s30]]
  %s32 = scalar_lea.smem %s0, 16
  %s33 = sld [smem:[%s32]]
  %s34 = scalar_lea.smem %s0, 17
  %s35 = sld [smem:[%s34]]
  %s36 = scalar_lea.smem %s0, 18
  %s37 = sld [smem:[%s36]]
  %s38 = scalar_lea.smem %s0, 19
  %s39 = sld [smem:[%s38]]
  %s40 = scalar_lea.smem %s0, 20
  %s41 = sld [smem:[%s40]]
  %s42 = scalar_lea.smem %s0, 21
  %s43 = sld [smem:[%s42]]
  %s44 = scalar_lea.smem %s0, 22
  %s45 = sld [smem:[%s44]]
  %s46 = scalar_lea.smem %s0, 23
  %s47 = sld [smem:[%s46]]
  %s48 = scalar_lea.smem %s0, 24
  %s49 = sld [smem:[%s48]]
  %s50 = scalar_lea.smem %s0, 25
  %s51 = sld [smem:[%s50]]
  %s52 = scalar_lea.smem %s0, 26
  %s53 = sld [smem:[%s52]]
  %s54 = scalar_lea.smem %s0, 27
  %s55 = sld [smem:[%s54]]
  %s56 = scalar_lea.smem %s0, 28
  %s57 = sld [smem:[%s56]]
  %s58 = scalar_lea.smem %s0, 29
  %s59 = sld [smem:[%s58]]
  %s60 = sld [smem:[#allocation0]]
  $region126: #{tpu_custom_call.1} parent=0
    _
  %s62 = ssub.s32 1, %s60
  %s63 = scalar_select 0, %s62, %s60
  $region1: #{tpu_custom_call.1} parent=0
    #allocation2 [shape = 'u8[512]{0}', space=vmem, size = 0x400, scoped, tag = 'output window, operand 0, single buffered']
    #allocation3 [shape = 's32[1]{0}', space=sflag, size = 0x4, scoped, tag = 'scoped memory for tpu_custom_call.1']
    %64 = vsyncpa [#allocation3], 0
    // Predicated region
    $region2: #{tpu_custom_call.1} parent=1 // pred_check
      _
    $region3: #{tpu_custom_call.1} parent=1 // pred_check_branch
      %66 = sbr.rel (0) target = $region5
    $region4: #{tpu_custom_call.1} parent=1 // pred_region
      _
    $region5: #{tpu_custom_call.1} parent=1 // pred_fallthru
      _
    // Predicated region
    $region6: #{tpu_custom_call.1} parent=1 // pred_check
      _
    $region7: #{tpu_custom_call.1} parent=1 // pred_check_branch
      %68 = sbr.rel (0) target = $region9
    $region8: #{tpu_custom_call.1} parent=1 // pred_region
      _
    $region9: #{tpu_custom_call.1} parent=1 // pred_fallthru
      _
    // Predicated region
    $region10: #{tpu_custom_call.1} parent=1 // pred_check
      _
    $region11: #{tpu_custom_call.1} parent=1 // pred_check_branch
      %70 = sbr.rel (0) target = $region13
    $region12: #{tpu_custom_call.1} parent=1 // pred_region
      _
    $region13: #{tpu_custom_call.1} parent=1 // pred_fallthru
      _
    // Predicated region
    $region14: #{tpu_custom_call.1} parent=1 // pred_check
      _
    $region15: #{tpu_custom_call.1} parent=1 // pred_check_branch
      %72 = sbr.rel (0) target = $region17
    $region16: #{tpu_custom_call.1} parent=1 // pred_region
      _
    $region17: #{tpu_custom_call.1} parent=1 // pred_fallthru
      _
    // Predicated region
    $region18: #{tpu_custom_call.1} parent=1 // pred_check
      _
    $region19: #{tpu_custom_call.1} parent=1 // pred_check_branch
      %74 = sbr.rel (0) target = $region21
    $region20: #{tpu_custom_call.1} parent=1 // pred_region
      _
    $region21: #{tpu_custom_call.1} parent=1 // pred_fallthru
      _
    // Predicated region
    $region22: #{tpu_custom_call.1} parent=1 // pred_check
      _
    $region23: #{tpu_custom_call.1} parent=1 // pred_check_branch
      %76 = sbr.rel (0) target = $region25
    $region24: #{tpu_custom_call.1} parent=1 // pred_region
      _
    $region25: #{tpu_custom_call.1} parent=1 // pred_fallthru
      _
    // Predicated region
    $region26: #{tpu_custom_call.1} parent=1 // pred_check
      _
    $region27: #{tpu_custom_call.1} parent=1 // pred_check_branch
      %78 = sbr.rel (0) target = $region29
    $region28: #{tpu_custom_call.1} parent=1 // pred_region
      _
    $region29: #{tpu_custom_call.1} parent=1 // pred_fallthru
      _
    // Predicated region
    $region30: #{tpu_custom_call.1} parent=1 // pred_check
      _
    $region31: #{tpu_custom_call.1} parent=1 // pred_check_branch
      %80 = sbr.rel (0) target = $region33
    $region32: #{tpu_custom_call.1} parent=1 // pred_region
      _
    $region33: #{tpu_custom_call.1} parent=1 // pred_fallthru
      _
    // Predicated region
    $region34: #{tpu_custom_call.1} parent=1 // pred_check
      _
    $region35: #{tpu_custom_call.1} parent=1 // pred_check_branch
      %82 = sbr.rel (0) target = $region37
    $region36: #{tpu_custom_call.1} parent=1 // pred_region
      _
    $region37: #{tpu_custom_call.1} parent=1 // pred_fallthru
      _
    // Predicated region
    $region38: #{tpu_custom_call.1} parent=1 // pred_check
      _
    $region39: #{tpu_custom_call.1} parent=1 // pred_check_branch
      %84 = sbr.rel (0) target = $region41
    $region40: #{tpu_custom_call.1} parent=1 // pred_region
      _
    $region41: #{tpu_custom_call.1} parent=1 // pred_fallthru
      _
    // Predicated region
    $region42: #{tpu_custom_call.1} parent=1 // pred_check
      _
    $region43: #{tpu_custom_call.1} parent=1 // pred_check_branch
      %86 = sbr.rel (0) target = $region45
    $region44: #{tpu_custom_call.1} parent=1 // pred_region
      _
    $region45: #{tpu_custom_call.1} parent=1 // pred_fallthru
      _
    // Predicated region
    $region46: #{tpu_custom_call.1} parent=1 // pred_check
      _
    $region47: #{tpu_custom_call.1} parent=1 // pred_check_branch
      %88 = sbr.rel (0) target = $region49
    $region48: #{tpu_custom_call.1} parent=1 // pred_region
      _
    $region49: #{tpu_custom_call.1} parent=1 // pred_fallthru
      _
    // Predicated region
    $region50: #{tpu_custom_call.1} parent=1 // pred_check
      _
    $region51: #{tpu_custom_call.1} parent=1 // pred_check_branch
      %90 = sbr.rel (0) target = $region53
    $region52: #{tpu_custom_call.1} parent=1 // pred_region
      _
    $region53: #{tpu_custom_call.1} parent=1 // pred_fallthru
      _
    // Predicated region
    $region54: #{tpu_custom_call.1} parent=1 // pred_check
      _
    $region55: #{tpu_custom_call.1} parent=1 // pred_check_branch
      %92 = sbr.rel (0) target = $region57
    $region56: #{tpu_custom_call.1} parent=1 // pred_region
      _
    $region57: #{tpu_custom_call.1} parent=1 // pred_fallthru
      _
    // Predicated region
    $region58: #{tpu_custom_call.1} parent=1 // pred_check
      _
    $region59: #{tpu_custom_call.1} parent=1 // pred_check_branch
      %94 = sbr.rel (0) target = $region61
    $region60: #{tpu_custom_call.1} parent=1 // pred_region
      _
    $region61: #{tpu_custom_call.1} parent=1 // pred_fallthru
      _
    // Predicated region
    $region62: #{tpu_custom_call.1} parent=1 // pred_check
      _
    $region63: #{tpu_custom_call.1} parent=1 // pred_check_branch
      %96 = sbr.rel (0) target = $region65
    $region64: #{tpu_custom_call.1} parent=1 // pred_region
      _
    $region65: #{tpu_custom_call.1} parent=1 // pred_fallthru
      _
    // Predicated region
    $region66: #{tpu_custom_call.1} parent=1 // pred_check
      _
    $region67: #{tpu_custom_call.1} parent=1 // pred_check_branch
      %98 = sbr.rel (0) target = $region69
    $region68: #{tpu_custom_call.1} parent=1 // pred_region
      _
    $region69: #{tpu_custom_call.1} parent=1 // pred_fallthru
      _
    // Predicated region
    $region70: #{tpu_custom_call.1} parent=1 // pred_check
      _
    $region71: #{tpu_custom_call.1} parent=1 // pred_check_branch
      %100 = sbr.rel (0) target = $region73
    $region72: #{tpu_custom_call.1} parent=1 // pred_region
      _
    $region73: #{tpu_custom_call.1} parent=1 // pred_fallthru
      _
    // Predicated region
    $region74: #{tpu_custom_call.1} parent=1 // pred_check
      _
    $region75: #{tpu_custom_call.1} parent=1 // pred_check_branch
      %102 = sbr.rel (0) target = $region77
    $region76: #{tpu_custom_call.1} parent=1 // pred_region
      _
    $region77: #{tpu_custom_call.1} parent=1 // pred_fallthru
      _
    // Predicated region
    $region78: #{tpu_custom_call.1} parent=1 // pred_check
      _
    $region79: #{tpu_custom_call.1} parent=1 // pred_check_branch
      %104 = sbr.rel (0) target = $region81
    $region80: #{tpu_custom_call.1} parent=1 // pred_region
      _
    $region81: #{tpu_custom_call.1} parent=1 // pred_fallthru
      _
    // Predicated region
    $region82: #{tpu_custom_call.1} parent=1 // pred_check
      _
    $region83: #{tpu_custom_call.1} parent=1 // pred_check_branch
      %106 = sbr.rel (0) target = $region85
    $region84: #{tpu_custom_call.1} parent=1 // pred_region
      _
    $region85: #{tpu_custom_call.1} parent=1 // pred_fallthru
      _
    // Predicated region
    $region86: #{tpu_custom_call.1} parent=1 // pred_check
      _
    $region87: #{tpu_custom_call.1} parent=1 // pred_check_branch
      %108 = sbr.rel (0) target = $region89
    $region88: #{tpu_custom_call.1} parent=1 // pred_region
      _
    $region89: #{tpu_custom_call.1} parent=1 // pred_fallthru
      _
    // Predicated region
    $region90: #{tpu_custom_call.1} parent=1 // pred_check
      _
    $region91: #{tpu_custom_call.1} parent=1 // pred_check_branch
      %110 = sbr.rel (0) target = $region93
    $region92: #{tpu_custom_call.1} parent=1 // pred_region
      _
    $region93: #{tpu_custom_call.1} parent=1 // pred_fallthru
      _
    // Predicated region
    $region94: #{tpu_custom_call.1} parent=1 // pred_check
      _
    $region95: #{tpu_custom_call.1} parent=1 // pred_check_branch
      %112 = sbr.rel (0) target = $region97
    $region96: #{tpu_custom_call.1} parent=1 // pred_region
      _
    $region97: #{tpu_custom_call.1} parent=1 // pred_fallthru
      _
    // Predicated region
    $region98: #{tpu_custom_call.1} parent=1 // pred_check
      _
    $region99: #{tpu_custom_call.1} parent=1 // pred_check_branch
      %114 = sbr.rel (0) target = $region101
    $region100: #{tpu_custom_call.1} parent=1 // pred_region
      _
    $region101: #{tpu_custom_call.1} parent=1 // pred_fallthru
      _
    // Predicated region
    $region102: #{tpu_custom_call.1} parent=1 // pred_check
      _
    $region103: #{tpu_custom_call.1} parent=1 // pred_check_branch
      %116 = sbr.rel (0) target = $region105
    $region104: #{tpu_custom_call.1} parent=1 // pred_region
      _
    $region105: #{tpu_custom_call.1} parent=1 // pred_fallthru
      _
    // Predicated region
    $region106: #{tpu_custom_call.1} parent=1 // pred_check
      _
    $region107: #{tpu_custom_call.1} parent=1 // pred_check_branch
      %118 = sbr.rel (0) target = $region109
    $region108: #{tpu_custom_call.1} parent=1 // pred_region
      _
    $region109: #{tpu_custom_call.1} parent=1 // pred_fallthru
      _
    // Predicated region
    $region110: #{tpu_custom_call.1} parent=1 // pred_check
      _
    $region111: #{tpu_custom_call.1} parent=1 // pred_check_branch
      %120 = sbr.rel (0) target = $region113
    $region112: #{tpu_custom_call.1} parent=1 // pred_region
      _
    $region113: #{tpu_custom_call.1} parent=1 // pred_fallthru
      _
    // Predicated region
    $region114: #{tpu_custom_call.1} parent=1 // pred_check
      _
    $region115: #{tpu_custom_call.1} parent=1 // pred_check_branch
      %122 = sbr.rel (0) target = $region117
    $region116: #{tpu_custom_call.1} parent=1 // pred_region
      _
    $region117: #{tpu_custom_call.1} parent=1 // pred_fallthru
      _
    %v123 = vld [vmem:[%s1] sm:$0xff]
    %v124 = vld [vmem:[%s5] sm:$0xff]
    %v125 = vld [vmem:[%s5 + $0x8] sm:$0xff]
    %v126 = vld [vmem:[%s5 + $0x10] sm:$0xf]
    %vm127 = vcmask 162816
    %v129 = vsel %vm127, %v123, 0
    %vm131 = vcmask 1043456
    %v133 = vsel %vm131, %v126, 0
    %135 = vmatpush.msra.mxu0 0.0
    %136 = vmatpush.msra.mxu0 0.0
    %137 = vmatpush.msra.mxu0 0.0
    %138 = vmatpush.msra.mxu0 0.0
    %139 = vmatpush.msra.mxu0 0.0
    %140 = vmatpush.msra.mxu0 0.0
    %141 = vmatpush.msra.mxu0 0.0
    %142 = vmatpush.msra.mxu0 0.0
    %143 = vmatpush.msra.mxu0 0.0
    %144 = vmatpush.msra.mxu0 0.0
    %145 = vmatpush.msra.mxu0 0.0
    %146 = vmatpush.msra.mxu0 0.0
    %147 = vmatpush.msra.mxu0 0.0
    %148 = vmatpush.msra.mxu0 %v133
    %149 = vmatpush.msra.mxu0 %v125
    %150 = vmatpush.msra.mxu0 %v124
    %151 = vmatmul.f32.gmra.mxu0 %v129
    %v152 = vpop.f32.mrf.mxu0
    %v153 = vadd.f32 0.0, %v152
    %154 = vdwg.mxu0
    %v155 = vld [vmem:[%s3] sm:$0xff]
    %v156 = vld [vmem:[%s7] sm:$0x1]
    %158 = vset.pattern.permute.xlu0 0
    %159 = vperm.xlu0 %158, %v155
    %v160 = vpop.permute.xlu0 %159
    %v163 = vperm.slane %v156, 0
    %v165 = vmul.f32 %v160, %v163
    %v166 = vld [vmem:[%s9] sm:$0x1]
    %v168 = vperm.slane %v166, 0
    %v170 = vadd.f32 %v165, %v168
    %v171 = vtanh.pop %v170
    %v172 = vmul.f32 %v153, 5.477226
    %v173 = vadd.f32 %v172, %v171
    %v174 = vld [vmem:[%s11] sm:$0x1]
    %v175 = vld [vmem:[%s13] sm:$0x1]
    %vm176 = vcmask 244736
    %v177 = vsel %vm176, %v173, 0.0
    %178 = vadd.xlane.f32.xlu0 %v177
    %v179 = vpop.xlane.xlu0 %178
    %v180 = vrcp.pop 30.0
    %v181 = vmul.f32 30.0, %v180
    %v182 = vsub.f32 1.0, %v181
    %v183 = vmul.f32 %v180, %v182
    %v184 = vadd.f32 %v180, %v183
    %vm185 = vweird.f32 %v180
    %v186 = vsel %vm185, %v180, %v184
    %v187 = vmul.f32 %v179, %v186
    %v188 = vsub.f32 %v173, %v187
    %v189 = vmul.f32 %v188, %v188
    %v190 = vsel %vm176, %v189, 0.0
    %191 = vadd.xlane.f32.xlu0 %v190
    %v192 = vpop.xlane.xlu0 %191
    %v193 = vmul.f32 %v192, %v186
    %v194 = vadd.f32 %v193, 1e-05
    %v195 = vrsqrt.pop %v194
    %v196 = vmul.f32 %v195, %v194
    %v197 = vmul.f32 %v196, %v195
    %v198 = vmul.f32 0.5, %v197
    %v199 = vsub.f32 1.5, %v198
    %v200 = vmul.f32 %v195, %v199
    %vm201 = vweird.f32 %v194
    %vm202 = vweird.f32 %v195
    %vm203 = vmor %vm201, %vm202
    %v204 = vsel %vm203, %v195, %v200
    %v205 = vmul.f32 %v188, %v204
    %v207 = vperm.slane %v174, 0
    %v209 = vmul.f32 %v205, %v207
    %v211 = vperm.slane %v175, 0
    %v213 = vadd.f32 %v209, %v211
    %v214 = vld [vmem:[%s15] sm:$0xff]
    %v215 = vld [vmem:[%s15 + $0x8] sm:$0xff]
    %v216 = vld [vmem:[%s15 + $0x10] sm:$0xff]
    %v217 = vld [vmem:[%s15 + $0x18] sm:$0x3f]
    %v218 = vld [vmem:[%s17] sm:$0x1]
    %v220 = vperm.slane %v218, 0
    %v223 = vsel %vm176, %v213, 0
    %vm225 = vcmask 1045504
    %v227 = vsel %vm225, %v217, 0
    %229 = vmatpush.msra.mxu0 0.0
    %230 = vmatpush.msra.mxu0 0.0
    %231 = vmatpush.msra.mxu0 0.0
    %232 = vmatpush.msra.mxu0 0.0
    %233 = vmatpush.msra.mxu0 0.0
    %234 = vmatpush.msra.mxu0 0.0
    %235 = vmatpush.msra.mxu0 0.0
    %236 = vmatpush.msra.mxu0 0.0
    %237 = vmatpush.msra.mxu0 0.0
    %238 = vmatpush.msra.mxu0 0.0
    %239 = vmatpush.msra.mxu0 0.0
    %240 = vmatpush.msra.mxu0 0.0
    %241 = vmatpush.msra.mxu0 %v227
    %242 = vmatpush.msra.mxu0 %v216
    %243 = vmatpush.msra.mxu0 %v215
    %244 = vmatpush.msra.mxu0 %v214
    %245 = vmatmul.f32.gmra.mxu0 %v223
    %v246 = vpop.f32.mrf.mxu0
    %v247 = vadd.f32 %v220, %v246
    %248 = vdwg.mxu0
    %v249 = vmul.f32 %v247, 0.18257418
    %v250 = vld [vmem:[%s19] sm:$0xff]
    %v251 = vld [vmem:[%s19 + $0x8] sm:$0xff]
    %v252 = vld [vmem:[%s19 + $0x10] sm:$0xff]
    %v253 = vld [vmem:[%s19 + $0x18] sm:$0x3f]
    %v254 = vld [vmem:[%s21] sm:$0x1]
    %v256 = vperm.slane %v254, 0
    %v259 = vsel %vm225, %v253, 0
    %261 = vmatpush.msra.mxu0 0.0
    %262 = vmatpush.msra.mxu0 0.0
    %263 = vmatpush.msra.mxu0 0.0
    %264 = vmatpush.msra.mxu0 0.0
    %265 = vmatpush.msra.mxu0 0.0
    %266 = vmatpush.msra.mxu0 0.0
    %267 = vmatpush.msra.mxu0 0.0
    %268 = vmatpush.msra.mxu0 0.0
    %269 = vmatpush.msra.mxu0 0.0
    %270 = vmatpush.msra.mxu0 0.0
    %271 = vmatpush.msra.mxu0 0.0
    %272 = vmatpush.msra.mxu0 0.0
    %273 = vmatpush.msra.mxu0 %v259
    %274 = vmatpush.msra.mxu0 %v252
    %275 = vmatpush.msra.mxu0 %v251
    %276 = vmatpush.msra.mxu0 %v250
    %277 = vmatmul.f32.gmra.mxu0 %v223
    %v278 = vpop.f32.mrf.mxu0
    %v279 = vadd.f32 %v256, %v278
    %280 = vdwg.mxu0
    %v281 = vld [vmem:[%s23] sm:$0xff]
    %v282 = vld [vmem:[%s23 + $0x8] sm:$0xff]
    %v283 = vld [vmem:[%s23 + $0x10] sm:$0xff]
    %v284 = vld [vmem:[%s23 + $0x18] sm:$0x3f]
    %v285 = vld [vmem:[%s25] sm:$0x1]
    %v287 = vperm.slane %v285, 0
    %v290 = vsel %vm225, %v284, 0
    %292 = vmatpush.msra.mxu0 0.0
    %293 = vmatpush.msra.mxu0 0.0
    %294 = vmatpush.msra.mxu0 0.0
    %295 = vmatpush.msra.mxu0 0.0
    %296 = vmatpush.msra.mxu0 0.0
    %297 = vmatpush.msra.mxu0 0.0
    %298 = vmatpush.msra.mxu0 0.0
    %299 = vmatpush.msra.mxu0 0.0
    %300 = vmatpush.msra.mxu0 0.0
    %301 = vmatpush.msra.mxu0 0.0
    %302 = vmatpush.msra.mxu0 0.0
    %303 = vmatpush.msra.mxu0 0.0
    %304 = vmatpush.msra.mxu0 %v290
    %305 = vmatpush.msra.mxu0 %v283
    %306 = vmatpush.msra.mxu0 %v282
    %307 = vmatpush.msra.mxu0 %v281
    %308 = vmatmul.f32.gmra.mxu0 %v223
    %v309 = vpop.f32.mrf.mxu0
    %v310 = vadd.f32 %v287, %v309
    %311 = vdwg.mxu0
    %v313 = vsel %vm176, %v249, 0
    %v316 = vsel %vm176, %v279, 0
    %318 = vmatpush.xpose.msra.mxu0 0.0
    %319 = vmatpush.xpose.msra.mxu0 0.0
    %320 = vmatpush.xpose.msra.mxu0 0.0
    %321 = vmatpush.xpose.msra.mxu0 0.0
    %322 = vmatpush.xpose.msra.mxu0 0.0
    %323 = vmatpush.xpose.msra.mxu0 0.0
    %324 = vmatpush.xpose.msra.mxu0 0.0
    %325 = vmatpush.xpose.msra.mxu0 0.0
    %326 = vmatpush.xpose.msra.mxu0 0.0
    %327 = vmatpush.xpose.msra.mxu0 0.0
    %328 = vmatpush.xpose.msra.mxu0 0.0
    %329 = vmatpush.xpose.msra.mxu0 0.0
    %330 = vmatpush.xpose.msra.mxu0 0.0
    %331 = vmatpush.xpose.msra.mxu0 0.0
    %332 = vmatpush.xpose.msra.mxu0 0.0
    %333 = vmatpush.xpose.msra.mxu0 %v316
    %334 = vmatmul.f32.gmra.mxu0 %v313
    %v335 = vpop.f32.mrf.mxu0
    %v336 = vadd.f32 0.0, %v335
    %337 = vdwg.mxu0
    %vm338 = vcmask 64512
    %v339 = vsel %vm338, %v336, -inf
    %340 = vmax.xlane.f32.xlu0 %v339
    %v341 = vpop.xlane.xlu0 %340
    %v342 = vsub.f32 %v336, %v341
    %v343 = vmul.f32 %v342, 1.442695
    %v344 = vpow.pop %v343
    %v345 = vsel %vm338, %v344, 0.0
    %346 = vadd.xlane.f32.xlu0 %v345
    %v347 = vpop.xlane.xlu0 %346
    %v348 = vrcp.pop %v347
    %v349 = vmul.f32 %v347, %v348
    %v350 = vsub.f32 1.0, %v349
    %v351 = vmul.f32 %v348, %v350
    %v352 = vadd.f32 %v348, %v351
    %vm353 = vweird.f32 %v347
    %vm354 = vweird.f32 %v348
    %vm355 = vmor %vm353, %vm354
    %v356 = vsel %vm355, %v348, %v352
    %v357 = vand.u32 2147483647, %v347
    %vm358 = vcmp.eq.f32.partialorder %v357, 8.507059e+37
    %v359 = vand.u32 %v347, 2147483648
    %v360 = vor.u32 1.1754944e-38, %v359
    %v361 = vsel %vm358, %v360, %v356
    %v362 = vmul.f32 %v344, %v361
    %v364 = vsel %vm338, %v362, 0
    %366 = vmatpush.msra.mxu0 0.0
    %367 = vmatpush.msra.mxu0 0.0
    %368 = vmatpush.msra.mxu0 0.0
    %369 = vmatpush.msra.mxu0 0.0
    %370 = vmatpush.msra.mxu0 0.0
    %371 = vmatpush.msra.mxu0 0.0
    %372 = vmatpush.msra.mxu0 0.0
    %373 = vmatpush.msra.mxu0 0.0
    %374 = vmatpush.msra.mxu0 0.0
    %375 = vmatpush.msra.mxu0 0.0
    %376 = vmatpush.msra.mxu0 0.0
    %377 = vmatpush.msra.mxu0 0.0
    %378 = vmatpush.msra.mxu0 0.0
    %379 = vmatpush.msra.mxu0 0.0
    %380 = vmatpush.msra.mxu0 0.0
    %381 = vmatpush.msra.mxu0 %v310
    %382 = vmatmul.f32.gmra.mxu0 %v364
    %v383 = vpop.f32.mrf.mxu0
    %v384 = vadd.f32 0.0, %v383
    %385 = vdwg.mxu0
    %v386 = vld [vmem:[%s27] sm:$0xff]
    %v387 = vld [vmem:[%s27 + $0x8] sm:$0xff]
    %v388 = vld [vmem:[%s27 + $0x10] sm:$0xff]
    %v389 = vld [vmem:[%s27 + $0x18] sm:$0x3f]
    %v390 = vld [vmem:[%s29] sm:$0x1]
    %v392 = vperm.slane %v390, 0
    %v395 = vsel %vm176, %v384, 0
    %v398 = vsel %vm225, %v389, 0
    %400 = vmatpush.msra.mxu0 0.0
    %401 = vmatpush.msra.mxu0 0.0
    %402 = vmatpush.msra.mxu0 0.0
    %403 = vmatpush.msra.mxu0 0.0
    %404 = vmatpush.msra.mxu0 0.0
    %405 = vmatpush.msra.mxu0 0.0
    %406 = vmatpush.msra.mxu0 0.0
    %407 = vmatpush.msra.mxu0 0.0
    %408 = vmatpush.msra.mxu0 0.0
    %409 = vmatpush.msra.mxu0 0.0
    %410 = vmatpush.msra.mxu0 0.0
    %411 = vmatpush.msra.mxu0 0.0
    %412 = vmatpush.msra.mxu0 %v398
    %413 = vmatpush.msra.mxu0 %v388
    %414 = vmatpush.msra.mxu0 %v387
    %415 = vmatpush.msra.mxu0 %v386
    %416 = vmatmul.f32.gmra.mxu0 %v395
    %v417 = vpop.f32.mrf.mxu0
    %v418 = vadd.f32 %v392, %v417
    %419 = vdwg.mxu0
    %v420 = vadd.f32 %v173, %v418
    %v421 = vld [vmem:[%s31] sm:$0x1]
    %v422 = vld [vmem:[%s33] sm:$0x1]
    %v423 = vsel %vm176, %v420, 0.0
    %424 = vadd.xlane.f32.xlu0 %v423
    %v425 = vpop.xlane.xlu0 %424
    %v426 = vmul.f32 %v425, %v186
    %v427 = vsub.f32 %v420, %v426
    %v428 = vmul.f32 %v427, %v427
    %v429 = vsel %vm176, %v428, 0.0
    %430 = vadd.xlane.f32.xlu0 %v429
    %v431 = vpop.xlane.xlu0 %430
    %v432 = vmul.f32 %v431, %v186
    %v433 = vadd.f32 %v432, 1e-05
    %v434 = vrsqrt.pop %v433
    %v435 = vmul.f32 %v434, %v433
    %v436 = vmul.f32 %v435, %v434
    %v437 = vmul.f32 0.5, %v436
    %v438 = vsub.f32 1.5, %v437
    %v439 = vmul.f32 %v434, %v438
    %vm440 = vweird.f32 %v433
    %vm441 = vweird.f32 %v434
    %vm442 = vmor %vm440, %vm441
    %v443 = vsel %vm442, %v434, %v439
    %v444 = vmul.f32 %v427, %v443
    %v446 = vperm.slane %v421, 0
    %v448 = vmul.f32 %v444, %v446
    %v450 = vperm.slane %v422, 0
    %v452 = vadd.f32 %v448, %v450
    %v453 = vld [vmem:[%s35] sm:$0xff]
    %v454 = vld [vmem:[%s35 + $0x8] sm:$0xff]
    %v455 = vld [vmem:[%s35 + $0x10] sm:$0xff]
    %v456 = vld [vmem:[%s35 + $0x18] sm:$0x3f]
    %v457 = vld [vmem:[%s37] sm:$0x1]
    %v459 = vperm.slane %v457, 0
    %v462 = vsel %vm176, %v452, 0
    %v465 = vsel %vm225, %v456, 0
    %467 = vmatpush.msra.mxu0 0.0
    %468 = vmatpush.msra.mxu0 0.0
    %469 = vmatpush.msra.mxu0 0.0
    %470 = vmatpush.msra.mxu0 0.0
    %471 = vmatpush.msra.mxu0 0.0
    %472 = vmatpush.msra.mxu0 0.0
    %473 = vmatpush.msra.mxu0 0.0
    %474 = vmatpush.msra.mxu0 0.0
    %475 = vmatpush.msra.mxu0 0.0
    %476 = vmatpush.msra.mxu0 0.0
    %477 = vmatpush.msra.mxu0 0.0
    %478 = vmatpush.msra.mxu0 0.0
    %479 = vmatpush.msra.mxu0 %v465
    %480 = vmatpush.msra.mxu0 %v455
    %481 = vmatpush.msra.mxu0 %v454
    %482 = vmatpush.msra.mxu0 %v453
    %483 = vmatmul.f32.gmra.mxu0 %v462
    %v484 = vpop.f32.mrf.mxu0
    %v485 = vadd.f32 %v459, %v484
    %486 = vdwg.mxu0
    %v487 = vmax.f32 %v485, 0.0
    %v488 = vld [vmem:[%s39] sm:$0xff]
    %v489 = vld [vmem:[%s39 + $0x8] sm:$0xff]
    %v490 = vld [vmem:[%s39 + $0x10] sm:$0xff]
    %v491 = vld [vmem:[%s39 + $0x18] sm:$0xff]
    %v492 = vld [vmem:[%s39 + $0x20] sm:$0xff]
    %v493 = vld [vmem:[%s39 + $0x28] sm:$0xff]
    %v494 = vld [vmem:[%s39 + $0x30] sm:$0xff]
    %v495 = vld [vmem:[%s39 + $0x38] sm:$0xff]
    %v496 = vld [vmem:[%s39 + $0x40] sm:$0xff]
    %v497 = vld [vmem:[%s39 + $0x48] sm:$0xff]
    %v498 = vld [vmem:[%s39 + $0x50] sm:$0xff]
    %v499 = vld [vmem:[%s39 + $0x58] sm:$0xff]
    %v500 = vld [vmem:[%s39 + $0x60] sm:$0xff]
    %v501 = vld [vmem:[%s39 + $0x68] sm:$0xff]
    %v502 = vld [vmem:[%s39 + $0x70] sm:$0xff]
    %v503 = vld [vmem:[%s41] sm:$0x1]
    %v505 = vperm.slane %v503, 0
    %vm507 = vcmask 982016
    %v509 = vsel %vm507, %v487, 0
    %511 = vmatpush.msra.mxu0 0.0
    %512 = vmatpush.msra.mxu0 %v502
    %513 = vmatpush.msra.mxu0 %v501
    %514 = vmatpush.msra.mxu0 %v500
    %515 = vmatpush.msra.mxu0 %v499
    %516 = vmatpush.msra.mxu0 %v498
    %517 = vmatpush.msra.mxu0 %v497
    %518 = vmatpush.msra.mxu0 %v496
    %519 = vmatpush.msra.mxu0 %v495
    %520 = vmatpush.msra.mxu0 %v494
    %521 = vmatpush.msra.mxu0 %v493
    %522 = vmatpush.msra.mxu0 %v492
    %523 = vmatpush.msra.mxu0 %v491
    %524 = vmatpush.msra.mxu0 %v490
    %525 = vmatpush.msra.mxu0 %v489
    %526 = vmatpush.msra.mxu0 %v488
    %527 = vmatmul.f32.gmra.mxu0 %v509
    %v528 = vpop.f32.mrf.mxu0
    %v529 = vadd.f32 %v505, %v528
    %530 = vdwg.mxu0
    %v531 = vadd.f32 %v420, %v529
    %s532 = scalar_lea.vmem %s11, 1
    %v533 = vld [vmem:[%s532] sm:$0x1]
    %s534 = scalar_lea.vmem %s13, 1
    %v535 = vld [vmem:[%s534] sm:$0x1]
    %v536 = vsel %vm176, %v531, 0.0
    %537 = vadd.xlane.f32.xlu0 %v536
    %v538 = vpop.xlane.xlu0 %537
    %v539 = vmul.f32 %v538, %v186
    %v540 = vsub.f32 %v531, %v539
    %v541 = vmul.f32 %v540, %v540
    %v542 = vsel %vm176, %v541, 0.0
    %543 = vadd.xlane.f32.xlu0 %v542
    %v544 = vpop.xlane.xlu0 %543
    %v545 = vmul.f32 %v544, %v186
    %v546 = vadd.f32 %v545, 1e-05
    %v547 = vrsqrt.pop %v546
    %v548 = vmul.f32 %v547, %v546
    %v549 = vmul.f32 %v548, %v547
    %v550 = vmul.f32 0.5, %v549
    %v551 = vsub.f32 1.5, %v550
    %v552 = vmul.f32 %v547, %v551
    %vm553 = vweird.f32 %v546
    %vm554 = vweird.f32 %v547
    %vm555 = vmor %vm553, %vm554
    %v556 = vsel %vm555, %v547, %v552
    %v557 = vmul.f32 %v540, %v556
    %v559 = vperm.slane %v533, 0
    %v561 = vmul.f32 %v557, %v559
    %v563 = vperm.slane %v535, 0
    %v565 = vadd.f32 %v561, %v563
    %s566 = scalar_lea.vmem %s15, 32
    %v567 = vld [vmem:[%s566] sm:$0xff]
    %v568 = vld [vmem:[%s566 + $0x8] sm:$0xff]
    %v569 = vld [vmem:[%s566 + $0x10] sm:$0xff]
    %v570 = vld [vmem:[%s566 + $0x18] sm:$0x3f]
    %s571 = scalar_lea.vmem %s17, 1
    %v572 = vld [vmem:[%s571] sm:$0x1]
    %v574 = vperm.slane %v572, 0
    %v577 = vsel %vm176, %v565, 0
    %v580 = vsel %vm225, %v570, 0
    %582 = vmatpush.msra.mxu0 0.0
    %583 = vmatpush.msra.mxu0 0.0
    %584 = vmatpush.msra.mxu0 0.0
    %585 = vmatpush.msra.mxu0 0.0
    %586 = vmatpush.msra.mxu0 0.0
    %587 = vmatpush.msra.mxu0 0.0
    %588 = vmatpush.msra.mxu0 0.0
    %589 = vmatpush.msra.mxu0 0.0
    %590 = vmatpush.msra.mxu0 0.0
    %591 = vmatpush.msra.mxu0 0.0
    %592 = vmatpush.msra.mxu0 0.0
    %593 = vmatpush.msra.mxu0 0.0
    %594 = vmatpush.msra.mxu0 %v580
    %595 = vmatpush.msra.mxu0 %v569
    %596 = vmatpush.msra.mxu0 %v568
    %597 = vmatpush.msra.mxu0 %v567
    %598 = vmatmul.f32.gmra.mxu0 %v577
    %v599 = vpop.f32.mrf.mxu0
    %v600 = vadd.f32 %v574, %v599
    %601 = vdwg.mxu0
    %v602 = vmul.f32 %v600, 0.18257418
    %s603 = scalar_lea.vmem %s19, 32
    %v604 = vld [vmem:[%s603] sm:$0xff]
    %v605 = vld [vmem:[%s603 + $0x8] sm:$0xff]
    %v606 = vld [vmem:[%s603 + $0x10] sm:$0xff]
    %v607 = vld [vmem:[%s603 + $0x18] sm:$0x3f]
    %s608 = scalar_lea.vmem %s21, 1
    %v609 = vld [vmem:[%s608] sm:$0x1]
    %v611 = vperm.slane %v609, 0
    %v614 = vsel %vm225, %v607, 0
    %616 = vmatpush.msra.mxu0 0.0
    %617 = vmatpush.msra.mxu0 0.0
    %618 = vmatpush.msra.mxu0 0.0
    %619 = vmatpush.msra.mxu0 0.0
    %620 = vmatpush.msra.mxu0 0.0
    %621 = vmatpush.msra.mxu0 0.0
    %622 = vmatpush.msra.mxu0 0.0
    %623 = vmatpush.msra.mxu0 0.0
    %624 = vmatpush.msra.mxu0 0.0
    %625 = vmatpush.msra.mxu0 0.0
    %626 = vmatpush.msra.mxu0 0.0
    %627 = vmatpush.msra.mxu0 0.0
    %628 = vmatpush.msra.mxu0 %v614
    %629 = vmatpush.msra.mxu0 %v606
    %630 = vmatpush.msra.mxu0 %v605
    %631 = vmatpush.msra.mxu0 %v604
    %632 = vmatmul.f32.gmra.mxu0 %v577
    %v633 = vpop.f32.mrf.mxu0
    %v634 = vadd.f32 %v611, %v633
    %635 = vdwg.mxu0
    %s636 = scalar_lea.vmem %s23, 32
    %v637 = vld [vmem:[%s636] sm:$0xff]
    %v638 = vld [vmem:[%s636 + $0x8] sm:$0xff]
    %v639 = vld [vmem:[%s636 + $0x10] sm:$0xff]
    %v640 = vld [vmem:[%s636 + $0x18] sm:$0x3f]
    %s641 = scalar_lea.vmem %s25, 1
    %v642 = vld [vmem:[%s641] sm:$0x1]
    %v644 = vperm.slane %v642, 0
    %v647 = vsel %vm225, %v640, 0
    %649 = vmatpush.msra.mxu0 0.0
    %650 = vmatpush.msra.mxu0 0.0
    %651 = vmatpush.msra.mxu0 0.0
    %652 = vmatpush.msra.mxu0 0.0
    %653 = vmatpush.msra.mxu0 0.0
    %654 = vmatpush.msra.mxu0 0.0
    %655 = vmatpush.msra.mxu0 0.0
    %656 = vmatpush.msra.mxu0 0.0
    %657 = vmatpush.msra.mxu0 0.0
    %658 = vmatpush.msra.mxu0 0.0
    %659 = vmatpush.msra.mxu0 0.0
    %660 = vmatpush.msra.mxu0 0.0
    %661 = vmatpush.msra.mxu0 %v647
    %662 = vmatpush.msra.mxu0 %v639
    %663 = vmatpush.msra.mxu0 %v638
    %664 = vmatpush.msra.mxu0 %v637
    %665 = vmatmul.f32.gmra.mxu0 %v577
    %v666 = vpop.f32.mrf.mxu0
    %v667 = vadd.f32 %v644, %v666
    %668 = vdwg.mxu0
    %v670 = vsel %vm176, %v602, 0
    %v673 = vsel %vm176, %v634, 0
    %675 = vmatpush.xpose.msra.mxu0 0.0
    %676 = vmatpush.xpose.msra.mxu0 0.0
    %677 = vmatpush.xpose.msra.mxu0 0.0
    %678 = vmatpush.xpose.msra.mxu0 0.0
    %679 = vmatpush.xpose.msra.mxu0 0.0
    %680 = vmatpush.xpose.msra.mxu0 0.0
    %681 = vmatpush.xpose.msra.mxu0 0.0
    %682 = vmatpush.xpose.msra.mxu0 0.0
    %683 = vmatpush.xpose.msra.mxu0 0.0
    %684 = vmatpush.xpose.msra.mxu0 0.0
    %685 = vmatpush.xpose.msra.mxu0 0.0
    %686 = vmatpush.xpose.msra.mxu0 0.0
    %687 = vmatpush.xpose.msra.mxu0 0.0
    %688 = vmatpush.xpose.msra.mxu0 0.0
    %689 = vmatpush.xpose.msra.mxu0 0.0
    %690 = vmatpush.xpose.msra.mxu0 %v673
    %691 = vmatmul.f32.gmra.mxu0 %v670
    %v692 = vpop.f32.mrf.mxu0
    %v693 = vadd.f32 0.0, %v692
    %694 = vdwg.mxu0
    %v695 = vsel %vm338, %v693, -inf
    %696 = vmax.xlane.f32.xlu0 %v695
    %v697 = vpop.xlane.xlu0 %696
    %v698 = vsub.f32 %v693, %v697
    %v699 = vmul.f32 %v698, 1.442695
    %v700 = vpow.pop %v699
    %v701 = vsel %vm338, %v700, 0.0
    %702 = vadd.xlane.f32.xlu0 %v701
    %v703 = vpop.xlane.xlu0 %702
    %v704 = vrcp.pop %v703
    %v705 = vmul.f32 %v703, %v704
    %v706 = vsub.f32 1.0, %v705
    %v707 = vmul.f32 %v704, %v706
    %v708 = vadd.f32 %v704, %v707
    %vm709 = vweird.f32 %v703
    %vm710 = vweird.f32 %v704
    %vm711 = vmor %vm709, %vm710
    %v712 = vsel %vm711, %v704, %v708
    %v713 = vand.u32 2147483647, %v703
    %vm714 = vcmp.eq.f32.partialorder %v713, 8.507059e+37
    %v715 = vand.u32 %v703, 2147483648
    %v716 = vor.u32 1.1754944e-38, %v715
    %v717 = vsel %vm714, %v716, %v712
    %v718 = vmul.f32 %v700, %v717
    %v720 = vsel %vm338, %v718, 0
    %722 = vmatpush.msra.mxu0 0.0
    %723 = vmatpush.msra.mxu0 0.0
    %724 = vmatpush.msra.mxu0 0.0
    %725 = vmatpush.msra.mxu0 0.0
    %726 = vmatpush.msra.mxu0 0.0
    %727 = vmatpush.msra.mxu0 0.0
    %728 = vmatpush.msra.mxu0 0.0
    %729 = vmatpush.msra.mxu0 0.0
    %730 = vmatpush.msra.mxu0 0.0
    %731 = vmatpush.msra.mxu0 0.0
    %732 = vmatpush.msra.mxu0 0.0
    %733 = vmatpush.msra.mxu0 0.0
    %734 = vmatpush.msra.mxu0 0.0
    %735 = vmatpush.msra.mxu0 0.0
    %736 = vmatpush.msra.mxu0 0.0
    %737 = vmatpush.msra.mxu0 %v667
    %738 = vmatmul.f32.gmra.mxu0 %v720
    %v739 = vpop.f32.mrf.mxu0
    %v740 = vadd.f32 0.0, %v739
    %741 = vdwg.mxu0
    %s742 = scalar_lea.vmem %s27, 32
    %v743 = vld [vmem:[%s742] sm:$0xff]
    %v744 = vld [vmem:[%s742 + $0x8] sm:$0xff]
    %v745 = vld [vmem:[%s742 + $0x10] sm:$0xff]
    %v746 = vld [vmem:[%s742 + $0x18] sm:$0x3f]
    %s747 = scalar_lea.vmem %s29, 1
    %v748 = vld [vmem:[%s747] sm:$0x1]
    %v750 = vperm.slane %v748, 0
    %v753 = vsel %vm176, %v740, 0
    %v756 = vsel %vm225, %v746, 0
    %758 = vmatpush.msra.mxu0 0.0
    %759 = vmatpush.msra.mxu0 0.0
    %760 = vmatpush.msra.mxu0 0.0
    %761 = vmatpush.msra.mxu0 0.0
    %762 = vmatpush.msra.mxu0 0.0
    %763 = vmatpush.msra.mxu0 0.0
    %764 = vmatpush.msra.mxu0 0.0
    %765 = vmatpush.msra.mxu0 0.0
    %766 = vmatpush.msra.mxu0 0.0
    %767 = vmatpush.msra.mxu0 0.0
    %768 = vmatpush.msra.mxu0 0.0
    %769 = vmatpush.msra.mxu0 0.0
    %770 = vmatpush.msra.mxu0 %v756
    %771 = vmatpush.msra.mxu0 %v745
    %772 = vmatpush.msra.mxu0 %v744
    %773 = vmatpush.msra.mxu0 %v743
    %774 = vmatmul.f32.gmra.mxu0 %v753
    %v775 = vpop.f32.mrf.mxu0
    %v776 = vadd.f32 %v750, %v775
    %777 = vdwg.mxu0
    %v778 = vadd.f32 %v531, %v776
    %s779 = scalar_lea.vmem %s31, 1
    %v780 = vld [vmem:[%s779] sm:$0x1]
    %s781 = scalar_lea.vmem %s33, 1
    %v782 = vld [vmem:[%s781] sm:$0x1]
    %v783 = vsel %vm176, %v778, 0.0
    %784 = vadd.xlane.f32.xlu0 %v783
    %v785 = vpop.xlane.xlu0 %784
    %v786 = vmul.f32 %v785, %v186
    %v787 = vsub.f32 %v778, %v786
    %v788 = vmul.f32 %v787, %v787
    %v789 = vsel %vm176, %v788, 0.0
    %790 = vadd.xlane.f32.xlu0 %v789
    %v791 = vpop.xlane.xlu0 %790
    %v792 = vmul.f32 %v791, %v186
    %v793 = vadd.f32 %v792, 1e-05
    %v794 = vrsqrt.pop %v793
    %v795 = vmul.f32 %v794, %v793
    %v796 = vmul.f32 %v795, %v794
    %v797 = vmul.f32 0.5, %v796
    %v798 = vsub.f32 1.5, %v797
    %v799 = vmul.f32 %v794, %v798
    %vm800 = vweird.f32 %v793
    %vm801 = vweird.f32 %v794
    %vm802 = vmor %vm800, %vm801
    %v803 = vsel %vm802, %v794, %v799
    %v804 = vmul.f32 %v787, %v803
    %v806 = vperm.slane %v780, 0
    %v808 = vmul.f32 %v804, %v806
    %v810 = vperm.slane %v782, 0
    %v812 = vadd.f32 %v808, %v810
    %s813 = scalar_lea.vmem %s35, 32
    %v814 = vld [vmem:[%s813] sm:$0xff]
    %v815 = vld [vmem:[%s813 + $0x8] sm:$0xff]
    %v816 = vld [vmem:[%s813 + $0x10] sm:$0xff]
    %v817 = vld [vmem:[%s813 + $0x18] sm:$0x3f]
    %s818 = scalar_lea.vmem %s37, 1
    %v819 = vld [vmem:[%s818] sm:$0x1]
    %v821 = vperm.slane %v819, 0
    %v824 = vsel %vm176, %v812, 0
    %v827 = vsel %vm225, %v817, 0
    %829 = vmatpush.msra.mxu0 0.0
    %830 = vmatpush.msra.mxu0 0.0
    %831 = vmatpush.msra.mxu0 0.0
    %832 = vmatpush.msra.mxu0 0.0
    %833 = vmatpush.msra.mxu0 0.0
    %834 = vmatpush.msra.mxu0 0.0
    %835 = vmatpush.msra.mxu0 0.0
    %836 = vmatpush.msra.mxu0 0.0
    %837 = vmatpush.msra.mxu0 0.0
    %838 = vmatpush.msra.mxu0 0.0
    %839 = vmatpush.msra.mxu0 0.0
    %840 = vmatpush.msra.mxu0 0.0
    %841 = vmatpush.msra.mxu0 %v827
    %842 = vmatpush.msra.mxu0 %v816
    %843 = vmatpush.msra.mxu0 %v815
    %844 = vmatpush.msra.mxu0 %v814
    %845 = vmatmul.f32.gmra.mxu0 %v824
    %v846 = vpop.f32.mrf.mxu0
    %v847 = vadd.f32 %v821, %v846
    %848 = vdwg.mxu0
    %v849 = vmax.f32 %v847, 0.0
    %s850 = scalar_lea.vmem %s39, 120
    %v851 = vld [vmem:[%s850] sm:$0xff]
    %v852 = vld [vmem:[%s850 + $0x8] sm:$0xff]
    %v853 = vld [vmem:[%s850 + $0x10] sm:$0xff]
    %v854 = vld [vmem:[%s850 + $0x18] sm:$0xff]
    %v855 = vld [vmem:[%s850 + $0x20] sm:$0xff]
    %v856 = vld [vmem:[%s850 + $0x28] sm:$0xff]
    %v857 = vld [vmem:[%s850 + $0x30] sm:$0xff]
    %v858 = vld [vmem:[%s850 + $0x38] sm:$0xff]
    %v859 = vld [vmem:[%s850 + $0x40] sm:$0xff]
    %v860 = vld [vmem:[%s850 + $0x48] sm:$0xff]
    %v861 = vld [vmem:[%s850 + $0x50] sm:$0xff]
    %v862 = vld [vmem:[%s850 + $0x58] sm:$0xff]
    %v863 = vld [vmem:[%s850 + $0x60] sm:$0xff]
    %v864 = vld [vmem:[%s850 + $0x68] sm:$0xff]
    %v865 = vld [vmem:[%s850 + $0x70] sm:$0xff]
    %s866 = scalar_lea.vmem %s41, 1
    %v867 = vld [vmem:[%s866] sm:$0x1]
    %v869 = vperm.slane %v867, 0
    %v872 = vsel %vm507, %v849, 0
    %874 = vmatpush.msra.mxu0 0.0
    %875 = vmatpush.msra.mxu0 %v865
    %876 = vmatpush.msra.mxu0 %v864
    %877 = vmatpush.msra.mxu0 %v863
    %878 = vmatpush.msra.mxu0 %v862
    %879 = vmatpush.msra.mxu0 %v861
    %880 = vmatpush.msra.mxu0 %v860
    %881 = vmatpush.msra.mxu0 %v859
    %882 = vmatpush.msra.mxu0 %v858
    %883 = vmatpush.msra.mxu0 %v857
    %884 = vmatpush.msra.mxu0 %v856
    %885 = vmatpush.msra.mxu0 %v855
    %886 = vmatpush.msra.mxu0 %v854
    %887 = vmatpush.msra.mxu0 %v853
    %888 = vmatpush.msra.mxu0 %v852
    %889 = vmatpush.msra.mxu0 %v851
    %890 = vmatmul.f32.gmra.mxu0 %v872
    %v891 = vpop.f32.mrf.mxu0
    %v892 = vadd.f32 %v869, %v891
    %893 = vdwg.mxu0
    %v894 = vadd.f32 %v778, %v892
    %s895 = scalar_lea.vmem %s11, 2
    %v896 = vld [vmem:[%s895] sm:$0x1]
    %s897 = scalar_lea.vmem %s13, 2
    %v898 = vld [vmem:[%s897] sm:$0x1]
    %v899 = vsel %vm176, %v894, 0.0
    %900 = vadd.xlane.f32.xlu0 %v899
    %v901 = vpop.xlane.xlu0 %900
    %v902 = vmul.f32 %v901, %v186
    %v903 = vsub.f32 %v894, %v902
    %v904 = vmul.f32 %v903, %v903
    %v905 = vsel %vm176, %v904, 0.0
    %906 = vadd.xlane.f32.xlu0 %v905
    %v907 = vpop.xlane.xlu0 %906
    %v908 = vmul.f32 %v907, %v186
    %v909 = vadd.f32 %v908, 1e-05
    %v910 = vrsqrt.pop %v909
    %v911 = vmul.f32 %v910, %v909
    %v912 = vmul.f32 %v911, %v910
    %v913 = vmul.f32 0.5, %v912
    %v914 = vsub.f32 1.5, %v913
    %v915 = vmul.f32 %v910, %v914
    %vm916 = vweird.f32 %v909
    %vm917 = vweird.f32 %v910
    %vm918 = vmor %vm916, %vm917
    %v919 = vsel %vm918, %v910, %v915
    %v920 = vmul.f32 %v903, %v919
    %v922 = vperm.slane %v896, 0
    %v924 = vmul.f32 %v920, %v922
    %v926 = vperm.slane %v898, 0
    %v928 = vadd.f32 %v924, %v926
    %s929 = scalar_lea.vmem %s15, 64
    %v930 = vld [vmem:[%s929] sm:$0xff]
    %v931 = vld [vmem:[%s929 + $0x8] sm:$0xff]
    %v932 = vld [vmem:[%s929 + $0x10] sm:$0xff]
    %v933 = vld [vmem:[%s929 + $0x18] sm:$0x3f]
    %s934 = scalar_lea.vmem %s17, 2
    %v935 = vld [vmem:[%s934] sm:$0x1]
    %v937 = vperm.slane %v935, 0
    %v940 = vsel %vm176, %v928, 0
    %v943 = vsel %vm225, %v933, 0
    %945 = vmatpush.msra.mxu0 0.0
    %946 = vmatpush.msra.mxu0 0.0
    %947 = vmatpush.msra.mxu0 0.0
    %948 = vmatpush.msra.mxu0 0.0
    %949 = vmatpush.msra.mxu0 0.0
    %950 = vmatpush.msra.mxu0 0.0
    %951 = vmatpush.msra.mxu0 0.0
    %952 = vmatpush.msra.mxu0 0.0
    %953 = vmatpush.msra.mxu0 0.0
    %954 = vmatpush.msra.mxu0 0.0
    %955 = vmatpush.msra.mxu0 0.0
    %956 = vmatpush.msra.mxu0 0.0
    %957 = vmatpush.msra.mxu0 %v943
    %958 = vmatpush.msra.mxu0 %v932
    %959 = vmatpush.msra.mxu0 %v931
    %960 = vmatpush.msra.mxu0 %v930
    %961 = vmatmul.f32.gmra.mxu0 %v940
    %v962 = vpop.f32.mrf.mxu0
    %v963 = vadd.f32 %v937, %v962
    %964 = vdwg.mxu0
    %v965 = vmul.f32 %v963, 0.18257418
    %s966 = scalar_lea.vmem %s19, 64
    %v967 = vld [vmem:[%s966] sm:$0xff]
    %v968 = vld [vmem:[%s966 + $0x8] sm:$0xff]
    %v969 = vld [vmem:[%s966 + $0x10] sm:$0xff]
    %v970 = vld [vmem:[%s966 + $0x18] sm:$0x3f]
    %s971 = scalar_lea.vmem %s21, 2
    %v972 = vld [vmem:[%s971] sm:$0x1]
    %v974 = vperm.slane %v972, 0
    %v977 = vsel %vm225, %v970, 0
    %979 = vmatpush.msra.mxu0 0.0
    %980 = vmatpush.msra.mxu0 0.0
    %981 = vmatpush.msra.mxu0 0.0
    %982 = vmatpush.msra.mxu0 0.0
    %983 = vmatpush.msra.mxu0 0.0
    %984 = vmatpush.msra.mxu0 0.0
    %985 = vmatpush.msra.mxu0 0.0
    %986 = vmatpush.msra.mxu0 0.0
    %987 = vmatpush.msra.mxu0 0.0
    %988 = vmatpush.msra.mxu0 0.0
    %989 = vmatpush.msra.mxu0 0.0
    %990 = vmatpush.msra.mxu0 0.0
    %991 = vmatpush.msra.mxu0 %v977
    %992 = vmatpush.msra.mxu0 %v969
    %993 = vmatpush.msra.mxu0 %v968
    %994 = vmatpush.msra.mxu0 %v967
    %995 = vmatmul.f32.gmra.mxu0 %v940
    %v996 = vpop.f32.mrf.mxu0
    %v997 = vadd.f32 %v974, %v996
    %998 = vdwg.mxu0
    %s999 = scalar_lea.vmem %s23, 64
    %v1000 = vld [vmem:[%s999] sm:$0xff]
    %v1001 = vld [vmem:[%s999 + $0x8] sm:$0xff]
    %v1002 = vld [vmem:[%s999 + $0x10] sm:$0xff]
    %v1003 = vld [vmem:[%s999 + $0x18] sm:$0x3f]
    %s1004 = scalar_lea.vmem %s25, 2
    %v1005 = vld [vmem:[%s1004] sm:$0x1]
    %v1007 = vperm.slane %v1005, 0
    %v1010 = vsel %vm225, %v1003, 0
    %1012 = vmatpush.msra.mxu0 0.0
    %1013 = vmatpush.msra.mxu0 0.0
    %1014 = vmatpush.msra.mxu0 0.0
    %1015 = vmatpush.msra.mxu0 0.0
    %1016 = vmatpush.msra.mxu0 0.0
    %1017 = vmatpush.msra.mxu0 0.0
    %1018 = vmatpush.msra.mxu0 0.0
    %1019 = vmatpush.msra.mxu0 0.0
    %1020 = vmatpush.msra.mxu0 0.0
    %1021 = vmatpush.msra.mxu0 0.0
    %1022 = vmatpush.msra.mxu0 0.0
    %1023 = vmatpush.msra.mxu0 0.0
    %1024 = vmatpush.msra.mxu0 %v1010
    %1025 = vmatpush.msra.mxu0 %v1002
    %1026 = vmatpush.msra.mxu0 %v1001
    %1027 = vmatpush.msra.mxu0 %v1000
    %1028 = vmatmul.f32.gmra.mxu0 %v940
    %v1029 = vpop.f32.mrf.mxu0
    %v1030 = vadd.f32 %v1007, %v1029
    %1031 = vdwg.mxu0
    %v1033 = vsel %vm176, %v965, 0
    %v1036 = vsel %vm176, %v997, 0
    %1038 = vmatpush.xpose.msra.mxu0 0.0
    %1039 = vmatpush.xpose.msra.mxu0 0.0
    %1040 = vmatpush.xpose.msra.mxu0 0.0
    %1041 = vmatpush.xpose.msra.mxu0 0.0
    %1042 = vmatpush.xpose.msra.mxu0 0.0
    %1043 = vmatpush.xpose.msra.mxu0 0.0
    %1044 = vmatpush.xpose.msra.mxu0 0.0
    %1045 = vmatpush.xpose.msra.mxu0 0.0
    %1046 = vmatpush.xpose.msra.mxu0 0.0
    %1047 = vmatpush.xpose.msra.mxu0 0.0
    %1048 = vmatpush.xpose.msra.mxu0 0.0
    %1049 = vmatpush.xpose.msra.mxu0 0.0
    %1050 = vmatpush.xpose.msra.mxu0 0.0
    %1051 = vmatpush.xpose.msra.mxu0 0.0
    %1052 = vmatpush.xpose.msra.mxu0 0.0
    %1053 = vmatpush.xpose.msra.mxu0 %v1036
    %1054 = vmatmul.f32.gmra.mxu0 %v1033
    %v1055 = vpop.f32.mrf.mxu0
    %v1056 = vadd.f32 0.0, %v1055
    %1057 = vdwg.mxu0
    %v1058 = vsel %vm338, %v1056, -inf
    %1059 = vmax.xlane.f32.xlu0 %v1058
    %v1060 = vpop.xlane.xlu0 %1059
    %v1061 = vsub.f32 %v1056, %v1060
    %v1062 = vmul.f32 %v1061, 1.442695
    %v1063 = vpow.pop %v1062
    %v1064 = vsel %vm338, %v1063, 0.0
    %1065 = vadd.xlane.f32.xlu0 %v1064
    %v1066 = vpop.xlane.xlu0 %1065
    %v1067 = vrcp.pop %v1066
    %v1068 = vmul.f32 %v1066, %v1067
    %v1069 = vsub.f32 1.0, %v1068
    %v1070 = vmul.f32 %v1067, %v1069
    %v1071 = vadd.f32 %v1067, %v1070
    %vm1072 = vweird.f32 %v1066
    %vm1073 = vweird.f32 %v1067
    %vm1074 = vmor %vm1072, %vm1073
    %v1075 = vsel %vm1074, %v1067, %v1071
    %v1076 = vand.u32 2147483647, %v1066
    %vm1077 = vcmp.eq.f32.partialorder %v1076, 8.507059e+37
    %v1078 = vand.u32 %v1066, 2147483648
    %v1079 = vor.u32 1.1754944e-38, %v1078
    %v1080 = vsel %vm1077, %v1079, %v1075
    %v1081 = vmul.f32 %v1063, %v1080
    %v1083 = vsel %vm338, %v1081, 0
    %1085 = vmatpush.msra.mxu0 0.0
    %1086 = vmatpush.msra.mxu0 0.0
    %1087 = vmatpush.msra.mxu0 0.0
    %1088 = vmatpush.msra.mxu0 0.0
    %1089 = vmatpush.msra.mxu0 0.0
    %1090 = vmatpush.msra.mxu0 0.0
    %1091 = vmatpush.msra.mxu0 0.0
    %1092 = vmatpush.msra.mxu0 0.0
    %1093 = vmatpush.msra.mxu0 0.0
    %1094 = vmatpush.msra.mxu0 0.0
    %1095 = vmatpush.msra.mxu0 0.0
    %1096 = vmatpush.msra.mxu0 0.0
    %1097 = vmatpush.msra.mxu0 0.0
    %1098 = vmatpush.msra.mxu0 0.0
    %1099 = vmatpush.msra.mxu0 0.0
    %1100 = vmatpush.msra.mxu0 %v1030
    %1101 = vmatmul.f32.gmra.mxu0 %v1083
    %v1102 = vpop.f32.mrf.mxu0
    %v1103 = vadd.f32 0.0, %v1102
    %1104 = vdwg.mxu0
    %s1105 = scalar_lea.vmem %s27, 64
    %v1106 = vld [vmem:[%s1105] sm:$0xff]
    %v1107 = vld [vmem:[%s1105 + $0x8] sm:$0xff]
    %v1108 = vld [vmem:[%s1105 + $0x10] sm:$0xff]
    %v1109 = vld [vmem:[%s1105 + $0x18] sm:$0x3f]
    %s1110 = scalar_lea.vmem %s29, 2
    %v1111 = vld [vmem:[%s1110] sm:$0x1]
    %v1113 = vperm.slane %v1111, 0
    %v1116 = vsel %vm176, %v1103, 0
    %v1119 = vsel %vm225, %v1109, 0
    %1121 = vmatpush.msra.mxu0 0.0
    %1122 = vmatpush.msra.mxu0 0.0
    %1123 = vmatpush.msra.mxu0 0.0
    %1124 = vmatpush.msra.mxu0 0.0
    %1125 = vmatpush.msra.mxu0 0.0
    %1126 = vmatpush.msra.mxu0 0.0
    %1127 = vmatpush.msra.mxu0 0.0
    %1128 = vmatpush.msra.mxu0 0.0
    %1129 = vmatpush.msra.mxu0 0.0
    %1130 = vmatpush.msra.mxu0 0.0
    %1131 = vmatpush.msra.mxu0 0.0
    %1132 = vmatpush.msra.mxu0 0.0
    %1133 = vmatpush.msra.mxu0 %v1119
    %1134 = vmatpush.msra.mxu0 %v1108
    %1135 = vmatpush.msra.mxu0 %v1107
    %1136 = vmatpush.msra.mxu0 %v1106
    %1137 = vmatmul.f32.gmra.mxu0 %v1116
    %v1138 = vpop.f32.mrf.mxu0
    %v1139 = vadd.f32 %v1113, %v1138
    %1140 = vdwg.mxu0
    %v1141 = vadd.f32 %v894, %v1139
    %s1142 = scalar_lea.vmem %s31, 2
    %v1143 = vld [vmem:[%s1142] sm:$0x1]
    %s1144 = scalar_lea.vmem %s33, 2
    %v1145 = vld [vmem:[%s1144] sm:$0x1]
    %v1146 = vsel %vm176, %v1141, 0.0
    %1147 = vadd.xlane.f32.xlu0 %v1146
    %v1148 = vpop.xlane.xlu0 %1147
    %v1149 = vmul.f32 %v1148, %v186
    %v1150 = vsub.f32 %v1141, %v1149
    %v1151 = vmul.f32 %v1150, %v1150
    %v1152 = vsel %vm176, %v1151, 0.0
    %1153 = vadd.xlane.f32.xlu0 %v1152
    %v1154 = vpop.xlane.xlu0 %1153
    %v1155 = vmul.f32 %v1154, %v186
    %v1156 = vadd.f32 %v1155, 1e-05
    %v1157 = vrsqrt.pop %v1156
    %v1158 = vmul.f32 %v1157, %v1156
    %v1159 = vmul.f32 %v1158, %v1157
    %v1160 = vmul.f32 0.5, %v1159
    %v1161 = vsub.f32 1.5, %v1160
    %v1162 = vmul.f32 %v1157, %v1161
    %vm1163 = vweird.f32 %v1156
    %vm1164 = vweird.f32 %v1157
    %vm1165 = vmor %vm1163, %vm1164
    %v1166 = vsel %vm1165, %v1157, %v1162
    %v1167 = vmul.f32 %v1150, %v1166
    %v1169 = vperm.slane %v1143, 0
    %v1171 = vmul.f32 %v1167, %v1169
    %v1173 = vperm.slane %v1145, 0
    %v1175 = vadd.f32 %v1171, %v1173
    %s1176 = scalar_lea.vmem %s35, 64
    %v1177 = vld [vmem:[%s1176] sm:$0xff]
    %v1178 = vld [vmem:[%s1176 + $0x8] sm:$0xff]
    %v1179 = vld [vmem:[%s1176 + $0x10] sm:$0xff]
    %v1180 = vld [vmem:[%s1176 + $0x18] sm:$0x3f]
    %s1181 = scalar_lea.vmem %s37, 2
    %v1182 = vld [vmem:[%s1181] sm:$0x1]
    %v1184 = vperm.slane %v1182, 0
    %v1187 = vsel %vm176, %v1175, 0
    %v1190 = vsel %vm225, %v1180, 0
    %1192 = vmatpush.msra.mxu0 0.0
    %1193 = vmatpush.msra.mxu0 0.0
    %1194 = vmatpush.msra.mxu0 0.0
    %1195 = vmatpush.msra.mxu0 0.0
    %1196 = vmatpush.msra.mxu0 0.0
    %1197 = vmatpush.msra.mxu0 0.0
    %1198 = vmatpush.msra.mxu0 0.0
    %1199 = vmatpush.msra.mxu0 0.0
    %1200 = vmatpush.msra.mxu0 0.0
    %1201 = vmatpush.msra.mxu0 0.0
    %1202 = vmatpush.msra.mxu0 0.0
    %1203 = vmatpush.msra.mxu0 0.0
    %1204 = vmatpush.msra.mxu0 %v1190
    %1205 = vmatpush.msra.mxu0 %v1179
    %1206 = vmatpush.msra.mxu0 %v1178
    %1207 = vmatpush.msra.mxu0 %v1177
    %1208 = vmatmul.f32.gmra.mxu0 %v1187
    %v1209 = vpop.f32.mrf.mxu0
    %v1210 = vadd.f32 %v1184, %v1209
    %1211 = vdwg.mxu0
    %v1212 = vmax.f32 %v1210, 0.0
    %s1213 = scalar_lea.vmem %s39, 240
    %v1214 = vld [vmem:[%s1213] sm:$0xff]
    %v1215 = vld [vmem:[%s1213 + $0x8] sm:$0xff]
    %v1216 = vld [vmem:[%s1213 + $0x10] sm:$0xff]
    %v1217 = vld [vmem:[%s1213 + $0x18] sm:$0xff]
    %v1218 = vld [vmem:[%s1213 + $0x20] sm:$0xff]
    %v1219 = vld [vmem:[%s1213 + $0x28] sm:$0xff]
    %v1220 = vld [vmem:[%s1213 + $0x30] sm:$0xff]
    %v1221 = vld [vmem:[%s1213 + $0x38] sm:$0xff]
    %v1222 = vld [vmem:[%s1213 + $0x40] sm:$0xff]
    %v1223 = vld [vmem:[%s1213 + $0x48] sm:$0xff]
    %v1224 = vld [vmem:[%s1213 + $0x50] sm:$0xff]
    %v1225 = vld [vmem:[%s1213 + $0x58] sm:$0xff]
    %v1226 = vld [vmem:[%s1213 + $0x60] sm:$0xff]
    %v1227 = vld [vmem:[%s1213 + $0x68] sm:$0xff]
    %v1228 = vld [vmem:[%s1213 + $0x70] sm:$0xff]
    %s1229 = scalar_lea.vmem %s41, 2
    %v1230 = vld [vmem:[%s1229] sm:$0x1]
    %v1232 = vperm.slane %v1230, 0
    %v1235 = vsel %vm507, %v1212, 0
    %1237 = vmatpush.msra.mxu0 0.0
    %1238 = vmatpush.msra.mxu0 %v1228
    %1239 = vmatpush.msra.mxu0 %v1227
    %1240 = vmatpush.msra.mxu0 %v1226
    %1241 = vmatpush.msra.mxu0 %v1225
    %1242 = vmatpush.msra.mxu0 %v1224
    %1243 = vmatpush.msra.mxu0 %v1223
    %1244 = vmatpush.msra.mxu0 %v1222
    %1245 = vmatpush.msra.mxu0 %v1221
    %1246 = vmatpush.msra.mxu0 %v1220
    %1247 = vmatpush.msra.mxu0 %v1219
    %1248 = vmatpush.msra.mxu0 %v1218
    %1249 = vmatpush.msra.mxu0 %v1217
    %1250 = vmatpush.msra.mxu0 %v1216
    %1251 = vmatpush.msra.mxu0 %v1215
    %1252 = vmatpush.msra.mxu0 %v1214
    %1253 = vmatmul.f32.gmra.mxu0 %v1235
    %v1254 = vpop.f32.mrf.mxu0
    %v1255 = vadd.f32 %v1232, %v1254
    %1256 = vdwg.mxu0
    %v1257 = vadd.f32 %v1141, %v1255
    %s1258 = scalar_lea.vmem %s11, 3
    %v1259 = vld [vmem:[%s1258] sm:$0x1]
    %s1260 = scalar_lea.vmem %s13, 3
    %v1261 = vld [vmem:[%s1260] sm:$0x1]
    %v1262 = vsel %vm176, %v1257, 0.0
    %1263 = vadd.xlane.f32.xlu0 %v1262
    %v1264 = vpop.xlane.xlu0 %1263
    %v1265 = vmul.f32 %v1264, %v186
    %v1266 = vsub.f32 %v1257, %v1265
    %v1267 = vmul.f32 %v1266, %v1266
    %v1268 = vsel %vm176, %v1267, 0.0
    %1269 = vadd.xlane.f32.xlu0 %v1268
    %v1270 = vpop.xlane.xlu0 %1269
    %v1271 = vmul.f32 %v1270, %v186
    %v1272 = vadd.f32 %v1271, 1e-05
    %v1273 = vrsqrt.pop %v1272
    %v1274 = vmul.f32 %v1273, %v1272
    %v1275 = vmul.f32 %v1274, %v1273
    %v1276 = vmul.f32 0.5, %v1275
    %v1277 = vsub.f32 1.5, %v1276
    %v1278 = vmul.f32 %v1273, %v1277
    %vm1279 = vweird.f32 %v1272
    %vm1280 = vweird.f32 %v1273
    %vm1281 = vmor %vm1279, %vm1280
    %v1282 = vsel %vm1281, %v1273, %v1278
    %v1283 = vmul.f32 %v1266, %v1282
    %v1285 = vperm.slane %v1259, 0
    %v1287 = vmul.f32 %v1283, %v1285
    %v1289 = vperm.slane %v1261, 0
    %v1291 = vadd.f32 %v1287, %v1289
    %s1292 = scalar_lea.vmem %s15, 96
    %v1293 = vld [vmem:[%s1292] sm:$0xff]
    %v1294 = vld [vmem:[%s1292 + $0x8] sm:$0xff]
    %v1295 = vld [vmem:[%s1292 + $0x10] sm:$0xff]
    %v1296 = vld [vmem:[%s1292 + $0x18] sm:$0x3f]
    %s1297 = scalar_lea.vmem %s17, 3
    %v1298 = vld [vmem:[%s1297] sm:$0x1]
    %v1300 = vperm.slane %v1298, 0
    %v1303 = vsel %vm176, %v1291, 0
    %v1306 = vsel %vm225, %v1296, 0
    %1308 = vmatpush.msra.mxu0 0.0
    %1309 = vmatpush.msra.mxu0 0.0
    %1310 = vmatpush.msra.mxu0 0.0
    %1311 = vmatpush.msra.mxu0 0.0
    %1312 = vmatpush.msra.mxu0 0.0
    %1313 = vmatpush.msra.mxu0 0.0
    %1314 = vmatpush.msra.mxu0 0.0
    %1315 = vmatpush.msra.mxu0 0.0
    %1316 = vmatpush.msra.mxu0 0.0
    %1317 = vmatpush.msra.mxu0 0.0
    %1318 = vmatpush.msra.mxu0 0.0
    %1319 = vmatpush.msra.mxu0 0.0
    %1320 = vmatpush.msra.mxu0 %v1306
    %1321 = vmatpush.msra.mxu0 %v1295
    %1322 = vmatpush.msra.mxu0 %v1294
    %1323 = vmatpush.msra.mxu0 %v1293
    %1324 = vmatmul.f32.gmra.mxu0 %v1303
    %v1325 = vpop.f32.mrf.mxu0
    %v1326 = vadd.f32 %v1300, %v1325
    %1327 = vdwg.mxu0
    %v1328 = vmul.f32 %v1326, 0.18257418
    %s1329 = scalar_lea.vmem %s19, 96
    %v1330 = vld [vmem:[%s1329] sm:$0xff]
    %v1331 = vld [vmem:[%s1329 + $0x8] sm:$0xff]
    %v1332 = vld [vmem:[%s1329 + $0x10] sm:$0xff]
    %v1333 = vld [vmem:[%s1329 + $0x18] sm:$0x3f]
    %s1334 = scalar_lea.vmem %s21, 3
    %v1335 = vld [vmem:[%s1334] sm:$0x1]
    %v1337 = vperm.slane %v1335, 0
    %v1340 = vsel %vm225, %v1333, 0
    %1342 = vmatpush.msra.mxu0 0.0
    %1343 = vmatpush.msra.mxu0 0.0
    %1344 = vmatpush.msra.mxu0 0.0
    %1345 = vmatpush.msra.mxu0 0.0
    %1346 = vmatpush.msra.mxu0 0.0
    %1347 = vmatpush.msra.mxu0 0.0
    %1348 = vmatpush.msra.mxu0 0.0
    %1349 = vmatpush.msra.mxu0 0.0
    %1350 = vmatpush.msra.mxu0 0.0
    %1351 = vmatpush.msra.mxu0 0.0
    %1352 = vmatpush.msra.mxu0 0.0
    %1353 = vmatpush.msra.mxu0 0.0
    %1354 = vmatpush.msra.mxu0 %v1340
    %1355 = vmatpush.msra.mxu0 %v1332
    %1356 = vmatpush.msra.mxu0 %v1331
    %1357 = vmatpush.msra.mxu0 %v1330
    %1358 = vmatmul.f32.gmra.mxu0 %v1303
    %v1359 = vpop.f32.mrf.mxu0
    %v1360 = vadd.f32 %v1337, %v1359
    %1361 = vdwg.mxu0
    %s1362 = scalar_lea.vmem %s23, 96
    %v1363 = vld [vmem:[%s1362] sm:$0xff]
    %v1364 = vld [vmem:[%s1362 + $0x8] sm:$0xff]
    %v1365 = vld [vmem:[%s1362 + $0x10] sm:$0xff]
    %v1366 = vld [vmem:[%s1362 + $0x18] sm:$0x3f]
    %s1367 = scalar_lea.vmem %s25, 3
    %v1368 = vld [vmem:[%s1367] sm:$0x1]
    %v1370 = vperm.slane %v1368, 0
    %v1373 = vsel %vm225, %v1366, 0
    %1375 = vmatpush.msra.mxu0 0.0
    %1376 = vmatpush.msra.mxu0 0.0
    %1377 = vmatpush.msra.mxu0 0.0
    %1378 = vmatpush.msra.mxu0 0.0
    %1379 = vmatpush.msra.mxu0 0.0
    %1380 = vmatpush.msra.mxu0 0.0
    %1381 = vmatpush.msra.mxu0 0.0
    %1382 = vmatpush.msra.mxu0 0.0
    %1383 = vmatpush.msra.mxu0 0.0
    %1384 = vmatpush.msra.mxu0 0.0
    %1385 = vmatpush.msra.mxu0 0.0
    %1386 = vmatpush.msra.mxu0 0.0
    %1387 = vmatpush.msra.mxu0 %v1373
    %1388 = vmatpush.msra.mxu0 %v1365
    %1389 = vmatpush.msra.mxu0 %v1364
    %1390 = vmatpush.msra.mxu0 %v1363
    %1391 = vmatmul.f32.gmra.mxu0 %v1303
    %v1392 = vpop.f32.mrf.mxu0
    %v1393 = vadd.f32 %v1370, %v1392
    %1394 = vdwg.mxu0
    %v1396 = vsel %vm176, %v1328, 0
    %v1399 = vsel %vm176, %v1360, 0
    %1401 = vmatpush.xpose.msra.mxu0 0.0
    %1402 = vmatpush.xpose.msra.mxu0 0.0
    %1403 = vmatpush.xpose.msra.mxu0 0.0
    %1404 = vmatpush.xpose.msra.mxu0 0.0
    %1405 = vmatpush.xpose.msra.mxu0 0.0
    %1406 = vmatpush.xpose.msra.mxu0 0.0
    %1407 = vmatpush.xpose.msra.mxu0 0.0
    %1408 = vmatpush.xpose.msra.mxu0 0.0
    %1409 = vmatpush.xpose.msra.mxu0 0.0
    %1410 = vmatpush.xpose.msra.mxu0 0.0
    %1411 = vmatpush.xpose.msra.mxu0 0.0
    %1412 = vmatpush.xpose.msra.mxu0 0.0
    %1413 = vmatpush.xpose.msra.mxu0 0.0
    %1414 = vmatpush.xpose.msra.mxu0 0.0
    %1415 = vmatpush.xpose.msra.mxu0 0.0
    %1416 = vmatpush.xpose.msra.mxu0 %v1399
    %1417 = vmatmul.f32.gmra.mxu0 %v1396
    %v1418 = vpop.f32.mrf.mxu0
    %v1419 = vadd.f32 0.0, %v1418
    %1420 = vdwg.mxu0
    %v1421 = vsel %vm338, %v1419, -inf
    %1422 = vmax.xlane.f32.xlu0 %v1421
    %v1423 = vpop.xlane.xlu0 %1422
    %v1424 = vsub.f32 %v1419, %v1423
    %v1425 = vmul.f32 %v1424, 1.442695
    %v1426 = vpow.pop %v1425
    %v1427 = vsel %vm338, %v1426, 0.0
    %1428 = vadd.xlane.f32.xlu0 %v1427
    %v1429 = vpop.xlane.xlu0 %1428
    %v1430 = vrcp.pop %v1429
    %v1431 = vmul.f32 %v1429, %v1430
    %v1432 = vsub.f32 1.0, %v1431
    %v1433 = vmul.f32 %v1430, %v1432
    %v1434 = vadd.f32 %v1430, %v1433
    %vm1435 = vweird.f32 %v1429
    %vm1436 = vweird.f32 %v1430
    %vm1437 = vmor %vm1435, %vm1436
    %v1438 = vsel %vm1437, %v1430, %v1434
    %v1439 = vand.u32 2147483647, %v1429
    %vm1440 = vcmp.eq.f32.partialorder %v1439, 8.507059e+37
    %v1441 = vand.u32 %v1429, 2147483648
    %v1442 = vor.u32 1.1754944e-38, %v1441
    %v1443 = vsel %vm1440, %v1442, %v1438
    %v1444 = vmul.f32 %v1426, %v1443
    %v1446 = vsel %vm338, %v1444, 0
    %1448 = vmatpush.msra.mxu0 0.0
    %1449 = vmatpush.msra.mxu0 0.0
    %1450 = vmatpush.msra.mxu0 0.0
    %1451 = vmatpush.msra.mxu0 0.0
    %1452 = vmatpush.msra.mxu0 0.0
    %1453 = vmatpush.msra.mxu0 0.0
    %1454 = vmatpush.msra.mxu0 0.0
    %1455 = vmatpush.msra.mxu0 0.0
    %1456 = vmatpush.msra.mxu0 0.0
    %1457 = vmatpush.msra.mxu0 0.0
    %1458 = vmatpush.msra.mxu0 0.0
    %1459 = vmatpush.msra.mxu0 0.0
    %1460 = vmatpush.msra.mxu0 0.0
    %1461 = vmatpush.msra.mxu0 0.0
    %1462 = vmatpush.msra.mxu0 0.0
    %1463 = vmatpush.msra.mxu0 %v1393
    %1464 = vmatmul.f32.gmra.mxu0 %v1446
    %v1465 = vpop.f32.mrf.mxu0
    %v1466 = vadd.f32 0.0, %v1465
    %1467 = vdwg.mxu0
    %s1468 = scalar_lea.vmem %s27, 96
    %v1469 = vld [vmem:[%s1468] sm:$0xff]
    %v1470 = vld [vmem:[%s1468 + $0x8] sm:$0xff]
    %v1471 = vld [vmem:[%s1468 + $0x10] sm:$0xff]
    %v1472 = vld [vmem:[%s1468 + $0x18] sm:$0x3f]
    %s1473 = scalar_lea.vmem %s29, 3
    %v1474 = vld [vmem:[%s1473] sm:$0x1]
    %v1476 = vperm.slane %v1474, 0
    %v1479 = vsel %vm176, %v1466, 0
    %v1482 = vsel %vm225, %v1472, 0
    %1484 = vmatpush.msra.mxu0 0.0
    %1485 = vmatpush.msra.mxu0 0.0
    %1486 = vmatpush.msra.mxu0 0.0
    %1487 = vmatpush.msra.mxu0 0.0
    %1488 = vmatpush.msra.mxu0 0.0
    %1489 = vmatpush.msra.mxu0 0.0
    %1490 = vmatpush.msra.mxu0 0.0
    %1491 = vmatpush.msra.mxu0 0.0
    %1492 = vmatpush.msra.mxu0 0.0
    %1493 = vmatpush.msra.mxu0 0.0
    %1494 = vmatpush.msra.mxu0 0.0
    %1495 = vmatpush.msra.mxu0 0.0
    %1496 = vmatpush.msra.mxu0 %v1482
    %1497 = vmatpush.msra.mxu0 %v1471
    %1498 = vmatpush.msra.mxu0 %v1470
    %1499 = vmatpush.msra.mxu0 %v1469
    %1500 = vmatmul.f32.gmra.mxu0 %v1479
    %v1501 = vpop.f32.mrf.mxu0
    %v1502 = vadd.f32 %v1476, %v1501
    %1503 = vdwg.mxu0
    %v1504 = vadd.f32 %v1257, %v1502
    %s1505 = scalar_lea.vmem %s31, 3
    %v1506 = vld [vmem:[%s1505] sm:$0x1]
    %s1507 = scalar_lea.vmem %s33, 3
    %v1508 = vld [vmem:[%s1507] sm:$0x1]
    %v1509 = vsel %vm176, %v1504, 0.0
    %1510 = vadd.xlane.f32.xlu0 %v1509
    %v1511 = vpop.xlane.xlu0 %1510
    %v1512 = vmul.f32 %v1511, %v186
    %v1513 = vsub.f32 %v1504, %v1512
    %v1514 = vmul.f32 %v1513, %v1513
    %v1515 = vsel %vm176, %v1514, 0.0
    %1516 = vadd.xlane.f32.xlu0 %v1515
    %v1517 = vpop.xlane.xlu0 %1516
    %v1518 = vmul.f32 %v1517, %v186
    %v1519 = vadd.f32 %v1518, 1e-05
    %v1520 = vrsqrt.pop %v1519
    %v1521 = vmul.f32 %v1520, %v1519
    %v1522 = vmul.f32 %v1521, %v1520
    %v1523 = vmul.f32 0.5, %v1522
    %v1524 = vsub.f32 1.5, %v1523
    %v1525 = vmul.f32 %v1520, %v1524
    %vm1526 = vweird.f32 %v1519
    %vm1527 = vweird.f32 %v1520
    %vm1528 = vmor %vm1526, %vm1527
    %v1529 = vsel %vm1528, %v1520, %v1525
    %v1530 = vmul.f32 %v1513, %v1529
    %v1532 = vperm.slane %v1506, 0
    %v1534 = vmul.f32 %v1530, %v1532
    %v1536 = vperm.slane %v1508, 0
    %v1538 = vadd.f32 %v1534, %v1536
    %s1539 = scalar_lea.vmem %s35, 96
    %v1540 = vld [vmem:[%s1539] sm:$0xff]
    %v1541 = vld [vmem:[%s1539 + $0x8] sm:$0xff]
    %v1542 = vld [vmem:[%s1539 + $0x10] sm:$0xff]
    %v1543 = vld [vmem:[%s1539 + $0x18] sm:$0x3f]
    %s1544 = scalar_lea.vmem %s37, 3
    %v1545 = vld [vmem:[%s1544] sm:$0x1]
    %v1547 = vperm.slane %v1545, 0
    %v1550 = vsel %vm176, %v1538, 0
    %v1553 = vsel %vm225, %v1543, 0
    %1555 = vmatpush.msra.mxu0 0.0
    %1556 = vmatpush.msra.mxu0 0.0
    %1557 = vmatpush.msra.mxu0 0.0
    %1558 = vmatpush.msra.mxu0 0.0
    %1559 = vmatpush.msra.mxu0 0.0
    %1560 = vmatpush.msra.mxu0 0.0
    %1561 = vmatpush.msra.mxu0 0.0
    %1562 = vmatpush.msra.mxu0 0.0
    %1563 = vmatpush.msra.mxu0 0.0
    %1564 = vmatpush.msra.mxu0 0.0
    %1565 = vmatpush.msra.mxu0 0.0
    %1566 = vmatpush.msra.mxu0 0.0
    %1567 = vmatpush.msra.mxu0 %v1553
    %1568 = vmatpush.msra.mxu0 %v1542
    %1569 = vmatpush.msra.mxu0 %v1541
    %1570 = vmatpush.msra.mxu0 %v1540
    %1571 = vmatmul.f32.gmra.mxu0 %v1550
    %v1572 = vpop.f32.mrf.mxu0
    %v1573 = vadd.f32 %v1547, %v1572
    %1574 = vdwg.mxu0
    %v1575 = vmax.f32 %v1573, 0.0
    %s1576 = scalar_lea.vmem %s39, 360
    %v1577 = vld [vmem:[%s1576] sm:$0xff]
    %v1578 = vld [vmem:[%s1576 + $0x8] sm:$0xff]
    %v1579 = vld [vmem:[%s1576 + $0x10] sm:$0xff]
    %v1580 = vld [vmem:[%s1576 + $0x18] sm:$0xff]
    %v1581 = vld [vmem:[%s1576 + $0x20] sm:$0xff]
    %v1582 = vld [vmem:[%s1576 + $0x28] sm:$0xff]
    %v1583 = vld [vmem:[%s1576 + $0x30] sm:$0xff]
    %v1584 = vld [vmem:[%s1576 + $0x38] sm:$0xff]
    %v1585 = vld [vmem:[%s1576 + $0x40] sm:$0xff]
    %v1586 = vld [vmem:[%s1576 + $0x48] sm:$0xff]
    %v1587 = vld [vmem:[%s1576 + $0x50] sm:$0xff]
    %v1588 = vld [vmem:[%s1576 + $0x58] sm:$0xff]
    %v1589 = vld [vmem:[%s1576 + $0x60] sm:$0xff]
    %v1590 = vld [vmem:[%s1576 + $0x68] sm:$0xff]
    %v1591 = vld [vmem:[%s1576 + $0x70] sm:$0xff]
    %s1592 = scalar_lea.vmem %s41, 3
    %v1593 = vld [vmem:[%s1592] sm:$0x1]
    %v1595 = vperm.slane %v1593, 0
    %v1598 = vsel %vm507, %v1575, 0
    %1600 = vmatpush.msra.mxu0 0.0
    %1601 = vmatpush.msra.mxu0 %v1591
    %1602 = vmatpush.msra.mxu0 %v1590
    %1603 = vmatpush.msra.mxu0 %v1589
    %1604 = vmatpush.msra.mxu0 %v1588
    %1605 = vmatpush.msra.mxu0 %v1587
    %1606 = vmatpush.msra.mxu0 %v1586
    %1607 = vmatpush.msra.mxu0 %v1585
    %1608 = vmatpush.msra.mxu0 %v1584
    %1609 = vmatpush.msra.mxu0 %v1583
    %1610 = vmatpush.msra.mxu0 %v1582
    %1611 = vmatpush.msra.mxu0 %v1581
    %1612 = vmatpush.msra.mxu0 %v1580
    %1613 = vmatpush.msra.mxu0 %v1579
    %1614 = vmatpush.msra.mxu0 %v1578
    %1615 = vmatpush.msra.mxu0 %v1577
    %1616 = vmatmul.f32.gmra.mxu0 %v1598
    %v1617 = vpop.f32.mrf.mxu0
    %v1618 = vadd.f32 %v1595, %v1617
    %1619 = vdwg.mxu0
    %v1620 = vadd.f32 %v1504, %v1618
    %v1621 = vld [vmem:[%s43] sm:$0x1]
    %v1622 = vld [vmem:[%s45] sm:$0x1]
    %v1623 = vsel %vm176, %v1620, 0.0
    %1624 = vadd.xlane.f32.xlu0 %v1623
    %v1625 = vpop.xlane.xlu0 %1624
    %v1626 = vmul.f32 %v1625, %v186
    %v1627 = vsub.f32 %v1620, %v1626
    %v1628 = vmul.f32 %v1627, %v1627
    %v1629 = vsel %vm176, %v1628, 0.0
    %1630 = vadd.xlane.f32.xlu0 %v1629
    %v1631 = vpop.xlane.xlu0 %1630
    %v1632 = vmul.f32 %v1631, %v186
    %v1633 = vadd.f32 %v1632, 1e-05
    %v1634 = vrsqrt.pop %v1633
    %v1635 = vmul.f32 %v1634, %v1633
    %v1636 = vmul.f32 %v1635, %v1634
    %v1637 = vmul.f32 0.5, %v1636
    %v1638 = vsub.f32 1.5, %v1637
    %v1639 = vmul.f32 %v1634, %v1638
    %vm1640 = vweird.f32 %v1633
    %vm1641 = vweird.f32 %v1634
    %vm1642 = vmor %vm1640, %vm1641
    %v1643 = vsel %vm1642, %v1634, %v1639
    %v1644 = vmul.f32 %v1627, %v1643
    %v1646 = vperm.slane %v1621, 0
    %v1648 = vmul.f32 %v1644, %v1646
    %v1650 = vperm.slane %v1622, 0
    %v1652 = vadd.f32 %v1648, %v1650
    %v1653 = vld [vmem:[%s47] sm:$0xff]
    %v1654 = vld [vmem:[%s47 + $0x8] sm:$0xff]
    %v1655 = vld [vmem:[%s47 + $0x10] sm:$0xff]
    %v1656 = vld [vmem:[%s47 + $0x18] sm:$0x3f]
    %v1657 = vld [vmem:[%s49] sm:$0x1]
    %v1659 = vrot.slane %v1652, 7
    %v1660 = vsel %vm176, %v1659, 0
    %v1663 = vsel %vm225, %v1656, 0
    %1665 = vmatpush.msra.mxu0 0.0
    %1666 = vmatpush.msra.mxu0 0.0
    %1667 = vmatpush.msra.mxu0 0.0
    %1668 = vmatpush.msra.mxu0 0.0
    %1669 = vmatpush.msra.mxu0 0.0
    %1670 = vmatpush.msra.mxu0 0.0
    %1671 = vmatpush.msra.mxu0 0.0
    %1672 = vmatpush.msra.mxu0 0.0
    %1673 = vmatpush.msra.mxu0 0.0
    %1674 = vmatpush.msra.mxu0 0.0
    %1675 = vmatpush.msra.mxu0 0.0
    %1676 = vmatpush.msra.mxu0 0.0
    %1677 = vmatpush.msra.mxu0 %v1663
    %1678 = vmatpush.msra.mxu0 %v1655
    %1679 = vmatpush.msra.mxu0 %v1654
    %1680 = vmatpush.msra.mxu0 %v1653
    %1681 = vmatmul.f32.gmra.mxu0 %v1660
    %v1682 = vpop.f32.mrf.mxu0
    %v1683 = vadd.f32 %v1657, %v1682
    %1684 = vdwg.mxu0
    %v1685 = vmax.f32 %v1683, 0.0
    %v1686 = vld [vmem:[%s51] sm:$0xff]
    %v1687 = vld [vmem:[%s51 + $0x8] sm:$0xff]
    %v1688 = vld [vmem:[%s51 + $0x10] sm:$0xff]
    %v1689 = vld [vmem:[%s51 + $0x18] sm:$0x3f]
    %v1690 = vld [vmem:[%s53] sm:$0x1]
    %v1692 = vsel %vm176, %v1685, 0
    %v1695 = vsel %vm225, %v1689, 0
    %1697 = vmatpush.msra.mxu0 0.0
    %1698 = vmatpush.msra.mxu0 0.0
    %1699 = vmatpush.msra.mxu0 0.0
    %1700 = vmatpush.msra.mxu0 0.0
    %1701 = vmatpush.msra.mxu0 0.0
    %1702 = vmatpush.msra.mxu0 0.0
    %1703 = vmatpush.msra.mxu0 0.0
    %1704 = vmatpush.msra.mxu0 0.0
    %1705 = vmatpush.msra.mxu0 0.0
    %1706 = vmatpush.msra.mxu0 0.0
    %1707 = vmatpush.msra.mxu0 0.0
    %1708 = vmatpush.msra.mxu0 0.0
    %1709 = vmatpush.msra.mxu0 %v1695
    %1710 = vmatpush.msra.mxu0 %v1688
    %1711 = vmatpush.msra.mxu0 %v1687
    %1712 = vmatpush.msra.mxu0 %v1686
    %1713 = vmatmul.f32.gmra.mxu0 %v1692
    %v1714 = vpop.f32.mrf.mxu0
    %v1715 = vadd.f32 %v1690, %v1714
    %1716 = vdwg.mxu0
    %v1718 = vadd.f32 %v1715, %v1659
    %v1719 = vld [vmem:[%s55] sm:$0xff]
    %v1720 = vld [vmem:[%s55 + $0x8] sm:$0xff]
    %v1721 = vld [vmem:[%s55 + $0x10] sm:$0xff]
    %v1722 = vld [vmem:[%s55 + $0x18] sm:$0x3f]
    %v1723 = vld [vmem:[%s57] sm:$0x1]
    %v1725 = vsel %vm176, %v1718, 0
    %v1728 = vsel %vm225, %v1722, 0
    %1730 = vmatpush.msra.mxu0 0.0
    %1731 = vmatpush.msra.mxu0 0.0
    %1732 = vmatpush.msra.mxu0 0.0
    %1733 = vmatpush.msra.mxu0 0.0
    %1734 = vmatpush.msra.mxu0 0.0
    %1735 = vmatpush.msra.mxu0 0.0
    %1736 = vmatpush.msra.mxu0 0.0
    %1737 = vmatpush.msra.mxu0 0.0
    %1738 = vmatpush.msra.mxu0 0.0
    %1739 = vmatpush.msra.mxu0 0.0
    %1740 = vmatpush.msra.mxu0 0.0
    %1741 = vmatpush.msra.mxu0 0.0
    %1742 = vmatpush.msra.mxu0 %v1728
    %1743 = vmatpush.msra.mxu0 %v1721
    %1744 = vmatpush.msra.mxu0 %v1720
    %1745 = vmatpush.msra.mxu0 %v1719
    %1746 = vmatmul.f32.gmra.mxu0 %v1725
    %v1747 = vpop.f32.mrf.mxu0
    %v1748 = vadd.f32 %v1723, %v1747
    %1749 = vdwg.mxu0
    %vm1750 = vcmask 237568
    %1751 = vst.msk [vmem:[#allocation2] sm:$0x1] %vm1750, %v1748
    // Predicated region
    $region118: #{tpu_custom_call.1} parent=1 // pred_check
      _
    $region119: #{tpu_custom_call.1} parent=1 // pred_check_branch
      %1753 = sbr.rel (0) target = $region121
    $region120: #{tpu_custom_call.1} parent=1 // pred_region
      %1755 = vsyncadd [#allocation3], 0
      %s1757 = sshll.u32 [#allocation2], 4
      %s1758 = int_to_ptr.vmem [resolvable:$true] %s1757
      %s1759 = sshll.u32 %s59, 4
      %s1760 = int_to_ptr.hbm [resolvable:$true] %s1759
      %1762 = dma.vmem_to_hbm [thread:$0]  %s1758, 16, %s1760, [#allocation3]
    $region121: #{tpu_custom_call.1} parent=1 // pred_fallthru
      _
    // Predicated region
    $region122: #{tpu_custom_call.1} parent=1 // pred_check
      _
    $region123: #{tpu_custom_call.1} parent=1 // pred_check_branch
      %1764 = sbr.rel (0) target = $region125
    $region124: #{tpu_custom_call.1} parent=1 // pred_region
      %1766 = dma.done [#allocation3], 16
    $region125: #{tpu_custom_call.1} parent=1 // pred_fallthru
      _
    %1767 = vsyncpa [#allocation3], 1

</llo_original>
